<compile_context>
chip_gen: v5e
topology: v5e:2x2
jax: 0.10.0
libtpu: 0.0.40
codegen_flags: <defaults>
</compile_context>

<pallas_src>
import functools

import jax
import jax.numpy as jnp
from jax import lax
from jax.experimental import pallas as pl
from jax.experimental.pallas import tpu as pltpu


def _mamba_block_kernel(
    x_ref, gamma_ref, beta_ref, wp_ref, bp_ref,
    wc_ref, bc_ref, wdbc_ref, wdt_ref, bdt_ref, alogT_ref, dpar_ref,
    out_ref,
    dl_ref, dx_ref, bm_ref, cm_ref, y_ref,
    *, block_b, seq_len, seq_chunk, dt_rank, d_state):
    BT, S, T = block_b, seq_len, seq_chunk
    R, N = dt_rank, d_state
    M = BT * S
    n_chunks = S // T
    D = x_ref.shape[-1]                       # dim == dim_inner (ED)

    # ---------------- Phase 1: fused projections (MXU, M = BT*S rows) -------
    x = x_ref[...].reshape(M, D)              # skip connection (pre-norm x)
    mu = jnp.mean(x, axis=-1, keepdims=True)
    var = jnp.mean((x - mu) ** 2, axis=-1, keepdims=True)
    xn = (x - mu) * lax.rsqrt(var + 1e-5) * gamma_ref[...] + beta_ref[...]

    # proj() is applied once: z1 and the SSM input share the same activation.
    xp = jnp.dot(xn, wp_ref[...], preferred_element_type=jnp.float32) + bp_ref[...]
    z = xp * jax.nn.sigmoid(xp)               # SiLU(z1)

    # forward + backward conv1d(kernel_size=1) fused into one matmul (out = 2D)
    xc2 = jax.nn.softplus(
        jnp.dot(xp, wc_ref[...], preferred_element_type=jnp.float32) + bc_ref[...])
    # (M, 2D): fwd xc in lanes [:D], bwd xc in lanes [D:]

    # Stack both directions along rows -> one deltaBC and one dt_proj matmul.
    xc_stack = jnp.concatenate([xc2[:, :D], xc2[:, D:]], axis=0)       # (2M, D)
    dbc = jnp.dot(xc_stack, wdbc_ref[...], preferred_element_type=jnp.float32)
    delta = jax.nn.softplus(
        jnp.dot(dbc[:, :R], wdt_ref[...], preferred_element_type=jnp.float32)
        + bdt_ref[...])                                                # (2M, D)
    dxs = delta * xc_stack                                             # (2M, D)

    At = -jnp.exp(alogT_ref[...])             # (N, D): lane-dense (ED last)
    At2 = jnp.concatenate([At, At], axis=1)   # (N, 2D): same A for both halves

    # ---------------- Phase 2: stage lane-stacked scan inputs in VMEM -------
    # fwd direction in lanes [:D] / [:N], bwd direction in lanes [D:] / [N:]
    dl_ref[...] = jnp.concatenate([delta[:M], delta[M:]], axis=1)      # (M, 2D)
    dx_ref[...] = jnp.concatenate([dxs[:M], dxs[M:]], axis=1)          # (M, 2D)
    bm_ref[...] = jnp.concatenate(
        [dbc[:M, R:R + N], dbc[M:, R:R + N]], axis=1)                  # (M, 2N)
    cm_ref[...] = jnp.concatenate(
        [dbc[:M, R + N:R + 2 * N], dbc[M:, R + N:R + 2 * N]], axis=1)  # (M, 2N)

    # ---------------- Phase 3: chunked bidirectional selective scan ---------
    def run_chunk(b, c, h):
        # h: (N, 2D) lane-stacked state (fwd | bwd)
        dyn = not isinstance(c, int)
        start = b * S + c * T
        if dyn and (S % 8 == 0) and (T % 8 == 0):
            start = pl.multiple_of(start, 8)

        dl = dl_ref[pl.ds(start, T), :]       # (T, 2D)
        dx = dx_ref[pl.ds(start, T), :]       # (T, 2D)
        bm = bm_ref[pl.ds(start, T), :]       # (T, 2N)
        cm = cm_ref[pl.ds(start, T), :]       # (T, 2N)

        # Vectorized, off-chain working tiles for the whole chunk.
        da = jnp.exp(dl[:, None, :] * At2[None, :, :])          # (T, N, 2D)
        bx = jnp.concatenate(
            [dx[:, None, :D] * bm[:, :N, None],
             dx[:, None, D:] * bm[:, N:, None]], axis=2)        # (T, N, 2D)
        cw = jnp.concatenate(
            [jnp.broadcast_to(cm[:, :N, None], (T, N, D)),
             jnp.broadcast_to(cm[:, N:, None], (T, N, D))], axis=2)

        rows = []
        for t in range(T):                    # static unroll of the recurrence
            h = da[t] * h + bx[t]             # single FMA on the stacked tile
            # reduce over state axis N (sublanes) -> (1, 2D); off the chain
            rows.append(jnp.sum(h * cw[t], axis=0, keepdims=True))
        y_ref[pl.ds(start, T), :] = jnp.concatenate(rows, axis=0)
        return h

    h0 = jnp.zeros((N, 2 * D), jnp.float32)
    for b in range(BT):                       # static loop over samples in block
        if n_chunks == 1:
            run_chunk(b, 0, h0)
        else:
            lax.fori_loop(0, n_chunks, functools.partial(run_chunk, b), h0)

    # ---------------- Phase 4: epilogue  (y1 + y2) * z + skip ---------------
    y2 = y_ref[...]                                       # (M, 2D)
    y = (y2[:, :D] + y2[:, D:]
         + dpar_ref[...] * (xc2[:, :D] + xc2[:, D:]))     # + D*xc for both dirs
    out_ref[...] = (y * z + x).reshape(BT, S, D)


def vision_mamba_block(x, params, *, dt_rank, d_state, block_b=1, seq_chunk=None):
    B, S, D = x.shape
    (gamma, beta, wp, bp, wcf, bcf, wcb, bcb,
     wdbc, wdt, bdt, alog, dpar) = params
    ED = alog.shape[0]
    assert ED == D, "module requires dim == dim_inner"
    assert B % block_b == 0

    if seq_chunk is None:
        seq_chunk = S
        for cand in (32, 16, 8):
            if S % cand == 0:
                seq_chunk = cand
                break
    assert S % seq_chunk == 0

    # Pure layout transforms outside the kernel: fuse fwd/bwd conv weights and
    # transpose A_log to (N, ED) so the scan state is lane-dense.
    wc_cat = jnp.concatenate([wcf, wcb], axis=1)      # (D, 2D)
    bc_cat = jnp.concatenate([bcf, bcb], axis=1)      # (1, 2D)
    alog_t = alog.T                                   # (N, ED)

    BT, N, R = block_b, d_state, dt_rank
    M = BT * S
    weights = (gamma, beta, wp, bp, wc_cat, bc_cat, wdbc, wdt, bdt, alog_t, dpar)

    kernel = functools.partial(
        _mamba_block_kernel, block_b=BT, seq_len=S, seq_chunk=seq_chunk,
        dt_rank=R, d_state=N)

    def full_spec(shape):
        nd = len(shape)
        return pl.BlockSpec(shape, lambda i, _nd=nd: (0,) * _nd)

    # Rough cost model so XLA schedules surrounding ops sensibly.
    m_tot = B * S
    flops = (2 * m_tot * D * D                       # proj
             + 2 * m_tot * D * 2 * D                 # fused conv1d(k=1)
             + 2 * 2 * m_tot * D * (R + 2 * N)       # deltaBC
             + 2 * 2 * m_tot * R * D                 # dt_proj
             + 2 * 8 * m_tot * N * D                 # scan (both directions)
             + 12 * m_tot * D)                       # LN / SiLU / epilogue
    transcendentals = m_tot * (2 * N * D + 6 * D)
    weight_bytes = 4 * sum(int(w.size) for w in weights)
    bytes_accessed = int(4 * 2 * m_tot * D + weight_bytes)

    # Explicit VMEM budget: scratch + double-buffered IO blocks + weights
    # (+ headroom for the per-chunk (T, N, 2D) working tiles).
    scratch_bytes = 4 * (3 * (M * 2 * D) + 2 * (M * 2 * N))
    chunk_bytes = 4 * 3 * (seq_chunk * N * 2 * D)
    io_bytes = 4 * 2 * 2 * (BT * S * D)
    vmem_limit = int(1.5 * (scratch_bytes + chunk_bytes + io_bytes
                            + weight_bytes)) + (4 << 20)
    vmem_limit = min(max(vmem_limit, 32 << 20), 64 << 20)

    return pl.pallas_call(
        kernel,
        out_shape=jax.ShapeDtypeStruct((B, S, D), jnp.float32),
        grid_spec=pltpu.PrefetchScalarGridSpec(
            num_scalar_prefetch=0,
            grid=(B // BT,),
            in_specs=[pl.BlockSpec((BT, S, D), lambda i: (i, 0, 0))]
                    + [full_spec(w.shape) for w in weights],
            out_specs=pl.BlockSpec((BT, S, D), lambda i: (i, 0, 0)),
            scratch_shapes=[
                pltpu.VMEM((M, 2 * D), jnp.float32),   # delta      (fwd | bwd)
                pltpu.VMEM((M, 2 * D), jnp.float32),   # delta * xc (fwd | bwd)
                pltpu.VMEM((M, 2 * N), jnp.float32),   # B          (fwd | bwd)
                pltpu.VMEM((M, 2 * N), jnp.float32),   # C          (fwd | bwd)
                pltpu.VMEM((M, 2 * D), jnp.float32),   # y          (fwd | bwd)
            ]),
        compiler_params=pltpu.CompilerParams(
            dimension_semantics=("parallel",),
            vmem_limit_bytes=vmem_limit),
        cost_estimate=pl.CostEstimate(
            flops=flops, transcendentals=transcendentals,
            bytes_accessed=bytes_accessed),
    )(x, *weights)


def reference(x, params, *, dt_rank, d_state):
    """Pure-JAX reference matching the PyTorch forward."""
    (gamma, beta, wp, bp, wcf, bcf, wcb, bcb,
     wdbc, wdt, bdt, alog, dpar) = params
    R, N = dt_rank, d_state
    Bb = x.shape[0]
    ED = alog.shape[0]

    mu = x.mean(-1, keepdims=True)
    var = ((x - mu) ** 2).mean(-1, keepdims=True)
    xn = (x - mu) / jnp.sqrt(var + 1e-5) * gamma + beta
    xp = xn @ wp + bp
    z = xp * jax.nn.sigmoid(xp)
    A = -jnp.exp(alog)

    def ssm_dir(wc, bc):
        xc = jax.nn.softplus(xp @ wc + bc)
        dbc = xc @ wdbc
        delta = jax.nn.softplus(dbc[..., :R] @ wdt + bdt)
        Bm = dbc[..., R:R + N]
        Cm = dbc[..., R + N:R + 2 * N]
        dA = jnp.exp(delta[..., None] * A)                       # (B,S,ED,N)
        bx = (delta * xc)[..., None] * Bm[..., None, :]          # (B,S,ED,N)

        def step(h, inp):
            da_t, bx_t = inp
            h = da_t * h + bx_t
            return h, h

        _, hs = lax.scan(step, jnp.zeros((Bb, ED, N), jnp.float32),
                         (jnp.moveaxis(dA, 1, 0), jnp.moveaxis(bx, 1, 0)))
        hs = jnp.moveaxis(hs, 0, 1)                              # (B,S,ED,N)
        return jnp.sum(hs * Cm[..., None, :], axis=-1) + dpar * xc

    y1 = ssm_dir(wcf, bcf)
    y2 = ssm_dir(wcb, bcb)
    return y1 * z + y2 * z + x


if __name__ == "__main__":
    # Small shapes consistent with the module: dim == dim_inner required.
    B, S, D = 2, 8, 32
    dim, dim_inner, dt_rank, d_state = D, D, 8, 16

    key = jax.random.PRNGKey(0)
    ks = jax.random.split(key, 12)

    def rnd(k, shape, scale=0.2):
        return (scale * jax.random.normal(k, shape)).astype(jnp.float32)

    gamma = jnp.ones((1, dim), jnp.float32)
    beta = jnp.zeros((1, dim), jnp.float32)
    wp = rnd(ks[0], (dim, dim))                       # proj (in, out)
    bp = rnd(ks[1], (1, dim), 0.05)
    wcf = rnd(ks[2], (dim, dim))                      # forward_conv1d (in, out)
    bcf = rnd(ks[3], (1, dim), 0.05)
    wcb = rnd(ks[4], (dim, dim))                      # backward_conv1d (in, out)
    bcb = rnd(ks[5], (1, dim), 0.05)
    wdbc = rnd(ks[6], (dim, dt_rank + 2 * d_state))   # deltaBC (in, out), no bias
    wdt = rnd(ks[7], (dt_rank, dim_inner))            # dt_proj (in, out)
    bdt = rnd(ks[8], (1, dim_inner), 0.05)
    alog = jnp.log(jnp.arange(1, d_state + 1, dtype=jnp.float32))[None, :]
    alog = jnp.tile(alog, (dim_inner, 1))             # A_log = log(1..N) repeated
    dpar = jnp.ones((1, dim_inner), jnp.float32)      # D = ones
    params = (gamma, beta, wp, bp, wcf, bcf, wcb, bcb, wdbc, wdt, bdt, alog, dpar)

    # Case 1: one sample per grid step (grid=(B,)), single scan chunk.
    x1 = jax.random.normal(ks[9], (B, S, D), jnp.float32)
    out1 = jax.block_until_ready(
        vision_mamba_block(x1, params, dt_rank=dt_rank, d_state=d_state))
    ref1 = reference(x1, params, dt_rank=dt_rank, d_state=d_state)
    assert out1.shape == (B, S, D)
    assert jnp.allclose(out1, ref1, atol=1e-2, rtol=1e-2), (
        float(jnp.max(jnp.abs(out1 - ref1))))

    # Case 2: batch folded into the block (bigger matmul M) + chunked fori scan.
    S2 = 16
    x2 = jax.random.normal(ks[10], (B, S2, D), jnp.float32)
    out2 = jax.block_until_ready(
        vision_mamba_block(x2, params, dt_rank=dt_rank, d_state=d_state,
                           block_b=B, seq_chunk=8))
    ref2 = reference(x2, params, dt_rank=dt_rank, d_state=d_state)
    assert out2.shape == (B, S2, D)
    assert jnp.allclose(out2, ref2, atol=1e-2, rtol=1e-2), (
        float(jnp.max(jnp.abs(out2 - ref2))))

    print("KERNEL_OK")
</pallas_src>

<mosaic_0001>
module attributes {stable_mosaic.version = 11 : i64} {
  func.func @_mamba_block_kernel(%arg0: i32, %arg1: memref<1x8x32xf32, #tpu.memory_space<vmem>>, %arg2: memref<1x32xf32, #tpu.memory_space<vmem>>, %arg3: memref<1x32xf32, #tpu.memory_space<vmem>>, %arg4: memref<32x32xf32, #tpu.memory_space<vmem>>, %arg5: memref<1x32xf32, #tpu.memory_space<vmem>>, %arg6: memref<32x64xf32, #tpu.memory_space<vmem>>, %arg7: memref<1x64xf32, #tpu.memory_space<vmem>>, %arg8: memref<32x40xf32, #tpu.memory_space<vmem>>, %arg9: memref<8x32xf32, #tpu.memory_space<vmem>>, %arg10: memref<1x32xf32, #tpu.memory_space<vmem>>, %arg11: memref<16x32xf32, #tpu.memory_space<vmem>>, %arg12: memref<1x32xf32, #tpu.memory_space<vmem>>, %arg13: memref<1x8x32xf32, #tpu.memory_space<vmem>>, %arg14: memref<8x64xf32, #tpu.memory_space<vmem>>, %arg15: memref<8x64xf32, #tpu.memory_space<vmem>>, %arg16: memref<8x32xf32, #tpu.memory_space<vmem>>, %arg17: memref<8x32xf32, #tpu.memory_space<vmem>>, %arg18: memref<8x64xf32, #tpu.memory_space<vmem>>) attributes {dimension_semantics = [#tpu.dimension_semantics<parallel>], iteration_bounds = array<i64: 2>, scalar_prefetch = 0 : i64, scratch_operands = 5 : i64, tpu.core_type = #tpu.core_type<tc>, window_params = [{transform_indices = @transform_0, window_bounds = array<i64: 1, 8, 32>}, {pipeline_mode = #tpu.pipeline_mode<synchronous>, transform_indices = @transform_1, window_bounds = array<i64: 1, 32>}, {pipeline_mode = #tpu.pipeline_mode<synchronous>, transform_indices = @transform_2, window_bounds = array<i64: 1, 32>}, {pipeline_mode = #tpu.pipeline_mode<synchronous>, transform_indices = @transform_3, window_bounds = array<i64: 32, 32>}, {pipeline_mode = #tpu.pipeline_mode<synchronous>, transform_indices = @transform_4, window_bounds = array<i64: 1, 32>}, {pipeline_mode = #tpu.pipeline_mode<synchronous>, transform_indices = @transform_5, window_bounds = array<i64: 32, 64>}, {pipeline_mode = #tpu.pipeline_mode<synchronous>, transform_indices = @transform_6, window_bounds = array<i64: 1, 64>}, {pipeline_mode = #tpu.pipeline_mode<synchronous>, transform_indices = @transform_7, window_bounds = array<i64: 32, 40>}, {pipeline_mode = #tpu.pipeline_mode<synchronous>, transform_indices = @transform_8, window_bounds = array<i64: 8, 32>}, {pipeline_mode = #tpu.pipeline_mode<synchronous>, transform_indices = @transform_9, window_bounds = array<i64: 1, 32>}, {pipeline_mode = #tpu.pipeline_mode<synchronous>, transform_indices = @transform_10, window_bounds = array<i64: 16, 32>}, {pipeline_mode = #tpu.pipeline_mode<synchronous>, transform_indices = @transform_11, window_bounds = array<i64: 1, 32>}, {transform_indices = @transform_12, window_bounds = array<i64: 1, 8, 32>}]} {
    %c0 = arith.constant 0 : index
    %c0_0 = arith.constant 0 : index
    %c0_1 = arith.constant 0 : index
    %0 = vector.load %arg1[%c0, %c0_0, %c0_1] : memref<1x8x32xf32, #tpu.memory_space<vmem>>, vector<1x8x32xf32>
    %1 = vector.shape_cast %0 : vector<1x8x32xf32> to vector<8x32xf32>
    %cst = arith.constant dense<0.000000e+00> : vector<8xf32>
    %2 = vector.multi_reduction <add>, %1, %cst [1] : vector<8x32xf32> to vector<8xf32>
    %3 = vector.shape_cast %2 : vector<8xf32> to vector<8x1xf32>
    %cst_2 = arith.constant 3.200000e+01 : f32
    %4 = vector.broadcast %cst_2 : f32 to vector<8x1xf32>
    %5 = arith.divf %3, %4 : vector<8x1xf32>
    %6 = vector.broadcast %5 : vector<8x1xf32> to vector<8x32xf32>
    %7 = arith.subf %1, %6 : vector<8x32xf32>
    %8 = arith.mulf %7, %7 : vector<8x32xf32>
    %cst_3 = arith.constant dense<0.000000e+00> : vector<8xf32>
    %9 = vector.multi_reduction <add>, %8, %cst_3 [1] : vector<8x32xf32> to vector<8xf32>
    %10 = vector.shape_cast %9 : vector<8xf32> to vector<8x1xf32>
    %cst_4 = arith.constant 3.200000e+01 : f32
    %11 = vector.broadcast %cst_4 : f32 to vector<8x1xf32>
    %12 = arith.divf %10, %11 : vector<8x1xf32>
    %13 = vector.broadcast %5 : vector<8x1xf32> to vector<8x32xf32>
    %14 = arith.subf %1, %13 : vector<8x32xf32>
    %cst_5 = arith.constant 9.99999974E-6 : f32
    %15 = vector.broadcast %cst_5 : f32 to vector<8x1xf32>
    %16 = arith.addf %12, %15 : vector<8x1xf32>
    %17 = math.rsqrt %16 : vector<8x1xf32>
    %18 = vector.broadcast %17 : vector<8x1xf32> to vector<8x32xf32>
    %19 = arith.mulf %14, %18 : vector<8x32xf32>
    %c0_6 = arith.constant 0 : index
    %c0_7 = arith.constant 0 : index
    %20 = vector.load %arg2[%c0_6, %c0_7] : memref<1x32xf32, #tpu.memory_space<vmem>>, vector<1x32xf32>
    %21 = vector.broadcast %20 : vector<1x32xf32> to vector<8x32xf32>
    %22 = arith.mulf %19, %21 : vector<8x32xf32>
    %c0_8 = arith.constant 0 : index
    %c0_9 = arith.constant 0 : index
    %23 = vector.load %arg3[%c0_8, %c0_9] : memref<1x32xf32, #tpu.memory_space<vmem>>, vector<1x32xf32>
    %24 = vector.broadcast %23 : vector<1x32xf32> to vector<8x32xf32>
    %25 = arith.addf %22, %24 : vector<8x32xf32>
    %c0_10 = arith.constant 0 : index
    %c0_11 = arith.constant 0 : index
    %26 = vector.load %arg4[%c0_10, %c0_11] : memref<32x32xf32, #tpu.memory_space<vmem>>, vector<32x32xf32>
    %cst_12 = arith.constant dense<0.000000e+00> : vector<8x32xf32>
    %27 = tpu.matmul %25, %26, %cst_12 {dimension_numbers = #tpu.dot_dimension_numbers<[1], [0], [0], [1], [0, 0, 1, 1], [], []>} : vector<8x32xf32>, vector<32x32xf32>, vector<8x32xf32> -> vector<8x32xf32>
    %c0_13 = arith.constant 0 : index
    %c0_14 = arith.constant 0 : index
    %28 = vector.load %arg5[%c0_13, %c0_14] : memref<1x32xf32, #tpu.memory_space<vmem>>, vector<1x32xf32>
    %29 = vector.broadcast %28 : vector<1x32xf32> to vector<8x32xf32>
    %30 = arith.addf %27, %29 : vector<8x32xf32>
    %31 = arith.negf %30 : vector<8x32xf32>
    %32 = math.exp %31 : vector<8x32xf32>
    %cst_15 = arith.constant 1.000000e+00 : f32
    %33 = vector.broadcast %cst_15 : f32 to vector<8x32xf32>
    %34 = arith.addf %33, %32 : vector<8x32xf32>
    %35 = arith.divf %33, %34 : vector<8x32xf32>
    %36 = arith.mulf %30, %35 : vector<8x32xf32>
    %c0_16 = arith.constant 0 : index
    %c0_17 = arith.constant 0 : index
    %37 = vector.load %arg6[%c0_16, %c0_17] : memref<32x64xf32, #tpu.memory_space<vmem>>, vector<32x64xf32>
    %cst_18 = arith.constant dense<0.000000e+00> : vector<8x64xf32>
    %38 = tpu.matmul %30, %37, %cst_18 {dimension_numbers = #tpu.dot_dimension_numbers<[1], [0], [0], [1], [0, 0, 1, 1], [], []>} : vector<8x32xf32>, vector<32x64xf32>, vector<8x64xf32> -> vector<8x64xf32>
    %c0_19 = arith.constant 0 : index
    %c0_20 = arith.constant 0 : index
    %39 = vector.load %arg7[%c0_19, %c0_20] : memref<1x64xf32, #tpu.memory_space<vmem>>, vector<1x64xf32>
    %40 = vector.broadcast %39 : vector<1x64xf32> to vector<8x64xf32>
    %41 = arith.addf %38, %40 : vector<8x64xf32>
    %cst_21 = arith.constant 0.000000e+00 : f32
    %42 = vector.broadcast %cst_21 : f32 to vector<8x64xf32>
    %43 = arith.maximumf %41, %42 : vector<8x64xf32>
    %44 = vector.broadcast %cst_21 : f32 to vector<8x64xf32>
    %45 = arith.subf %41, %44 : vector<8x64xf32>
    %46 = arith.cmpf one, %45, %45 : vector<8x64xf32>
    %47 = vector.broadcast %cst_21 : f32 to vector<8x64xf32>
    %48 = arith.addf %41, %47 : vector<8x64xf32>
    %49 = math.absf %45 : vector<8x64xf32>
    %cst_22 = arith.constant 0.000000e+00 : f32
    %50 = vector.broadcast %cst_22 : f32 to vector<8x64xf32>
    %51 = arith.subf %50, %49 : vector<8x64xf32>
    %52 = math.exp %51 : vector<8x64xf32>
    %53 = math.log1p %52 : vector<8x64xf32>
    %54 = arith.addf %43, %53 : vector<8x64xf32>
    %55 = arith.select %46, %48, %54 : vector<8x64xi1>, vector<8x64xf32>
    %56 = vector.extract_strided_slice %55 {offsets = [0, 0], sizes = [8, 32], strides = [1, 1]} : vector<8x64xf32> to vector<8x32xf32>
    %57 = vector.extract_strided_slice %55 {offsets = [0, 32], sizes = [8, 32], strides = [1, 1]} : vector<8x64xf32> to vector<8x32xf32>
    %58 = tpu.concatenate %56, %57 in 0 : vector<8x32xf32>, vector<8x32xf32> -> vector<16x32xf32>
    %c0_23 = arith.constant 0 : index
    %c0_24 = arith.constant 0 : index
    %59 = vector.load %arg8[%c0_23, %c0_24] : memref<32x40xf32, #tpu.memory_space<vmem>>, vector<32x40xf32>
    %cst_25 = arith.constant dense<0.000000e+00> : vector<16x40xf32>
    %60 = tpu.matmul %58, %59, %cst_25 {dimension_numbers = #tpu.dot_dimension_numbers<[1], [0], [0], [1], [0, 0, 1, 1], [], []>} : vector<16x32xf32>, vector<32x40xf32>, vector<16x40xf32> -> vector<16x40xf32>
    %61 = vector.extract_strided_slice %60 {offsets = [0, 0], sizes = [16, 8], strides = [1, 1]} : vector<16x40xf32> to vector<16x8xf32>
    %c0_26 = arith.constant 0 : index
    %c0_27 = arith.constant 0 : index
    %62 = vector.load %arg9[%c0_26, %c0_27] : memref<8x32xf32, #tpu.memory_space<vmem>>, vector<8x32xf32>
    %cst_28 = arith.constant dense<0.000000e+00> : vector<16x32xf32>
    %63 = tpu.matmul %61, %62, %cst_28 {dimension_numbers = #tpu.dot_dimension_numbers<[1], [0], [0], [1], [0, 0, 1, 1], [], []>} : vector<16x8xf32>, vector<8x32xf32>, vector<16x32xf32> -> vector<16x32xf32>
    %c0_29 = arith.constant 0 : index
    %c0_30 = arith.constant 0 : index
    %64 = vector.load %arg10[%c0_29, %c0_30] : memref<1x32xf32, #tpu.memory_space<vmem>>, vector<1x32xf32>
    %65 = vector.broadcast %64 : vector<1x32xf32> to vector<16x32xf32>
    %66 = arith.addf %63, %65 : vector<16x32xf32>
    %cst_31 = arith.constant 0.000000e+00 : f32
    %67 = vector.broadcast %cst_31 : f32 to vector<16x32xf32>
    %68 = arith.maximumf %66, %67 : vector<16x32xf32>
    %69 = vector.broadcast %cst_31 : f32 to vector<16x32xf32>
    %70 = arith.subf %66, %69 : vector<16x32xf32>
    %71 = arith.cmpf one, %70, %70 : vector<16x32xf32>
    %72 = vector.broadcast %cst_31 : f32 to vector<16x32xf32>
    %73 = arith.addf %66, %72 : vector<16x32xf32>
    %74 = math.absf %70 : vector<16x32xf32>
    %cst_32 = arith.constant 0.000000e+00 : f32
    %75 = vector.broadcast %cst_32 : f32 to vector<16x32xf32>
    %76 = arith.subf %75, %74 : vector<16x32xf32>
    %77 = math.exp %76 : vector<16x32xf32>
    %78 = math.log1p %77 : vector<16x32xf32>
    %79 = arith.addf %68, %78 : vector<16x32xf32>
    %80 = arith.select %71, %73, %79 : vector<16x32xi1>, vector<16x32xf32>
    %81 = arith.mulf %80, %58 : vector<16x32xf32>
    %c0_33 = arith.constant 0 : index
    %c0_34 = arith.constant 0 : index
    %82 = vector.load %arg11[%c0_33, %c0_34] : memref<16x32xf32, #tpu.memory_space<vmem>>, vector<16x32xf32>
    %83 = math.exp %82 : vector<16x32xf32>
    %cst_35 = arith.constant 0.000000e+00 : f32
    %84 = vector.broadcast %cst_35 : f32 to vector<16x32xf32>
    %85 = arith.subf %84, %83 : vector<16x32xf32>
    %86 = tpu.concatenate %85, %85 in 1 : vector<16x32xf32>, vector<16x32xf32> -> vector<16x64xf32>
    %87 = vector.extract_strided_slice %80 {offsets = [0, 0], sizes = [8, 32], strides = [1, 1]} : vector<16x32xf32> to vector<8x32xf32>
    %88 = vector.extract_strided_slice %80 {offsets = [8, 0], sizes = [8, 32], strides = [1, 1]} : vector<16x32xf32> to vector<8x32xf32>
    %89 = tpu.concatenate %87, %88 in 1 : vector<8x32xf32>, vector<8x32xf32> -> vector<8x64xf32>
    %c0_36 = arith.constant 0 : index
    %c0_37 = arith.constant 0 : index
    %90 = vector.load %arg14[%c0_36, %c0_37] : memref<8x64xf32, #tpu.memory_space<vmem>>, vector<8x64xf32>
    tpu.vector_store %arg14[%c0_36, %c0_37], %89 {strides = array<i32>} : memref<8x64xf32, #tpu.memory_space<vmem>>, vector<8x64xf32>,
    %91 = vector.extract_strided_slice %81 {offsets = [0, 0], sizes = [8, 32], strides = [1, 1]} : vector<16x32xf32> to vector<8x32xf32>
    %92 = vector.extract_strided_slice %81 {offsets = [8, 0], sizes = [8, 32], strides = [1, 1]} : vector<16x32xf32> to vector<8x32xf32>
    %93 = tpu.concatenate %91, %92 in 1 : vector<8x32xf32>, vector<8x32xf32> -> vector<8x64xf32>
    %c0_38 = arith.constant 0 : index
    %c0_39 = arith.constant 0 : index
    %94 = vector.load %arg15[%c0_38, %c0_39] : memref<8x64xf32, #tpu.memory_space<vmem>>, vector<8x64xf32>
    tpu.vector_store %arg15[%c0_38, %c0_39], %93 {strides = array<i32>} : memref<8x64xf32, #tpu.memory_space<vmem>>, vector<8x64xf32>,
    %95 = vector.extract_strided_slice %60 {offsets = [0, 8], sizes = [8, 16], strides = [1, 1]} : vector<16x40xf32> to vector<8x16xf32>
    %96 = vector.extract_strided_slice %60 {offsets = [8, 8], sizes = [8, 16], strides = [1, 1]} : vector<16x40xf32> to vector<8x16xf32>
    %97 = tpu.concatenate %95, %96 in 1 : vector<8x16xf32>, vector<8x16xf32> -> vector<8x32xf32>
    %c0_40 = arith.constant 0 : index
    %c0_41 = arith.constant 0 : index
    %98 = vector.load %arg16[%c0_40, %c0_41] : memref<8x32xf32, #tpu.memory_space<vmem>>, vector<8x32xf32>
    tpu.vector_store %arg16[%c0_40, %c0_41], %97 {strides = array<i32>} : memref<8x32xf32, #tpu.memory_space<vmem>>, vector<8x32xf32>,
    %99 = vector.extract_strided_slice %60 {offsets = [0, 24], sizes = [8, 16], strides = [1, 1]} : vector<16x40xf32> to vector<8x16xf32>
    %100 = vector.extract_strided_slice %60 {offsets = [8, 24], sizes = [8, 16], strides = [1, 1]} : vector<16x40xf32> to vector<8x16xf32>
    %101 = tpu.concatenate %99, %100 in 1 : vector<8x16xf32>, vector<8x16xf32> -> vector<8x32xf32>
    %c0_42 = arith.constant 0 : index
    %c0_43 = arith.constant 0 : index
    %102 = vector.load %arg17[%c0_42, %c0_43] : memref<8x32xf32, #tpu.memory_space<vmem>>, vector<8x32xf32>
    tpu.vector_store %arg17[%c0_42, %c0_43], %101 {strides = array<i32>} : memref<8x32xf32, #tpu.memory_space<vmem>>, vector<8x32xf32>,
    %cst_44 = arith.constant 0.000000e+00 : f32
    %103 = vector.broadcast %cst_44 : f32 to vector<16x64xf32>
    %c0_45 = arith.constant 0 : index
    %c0_46 = arith.constant 0 : index
    %104 = vector.load %arg14[%c0_45, %c0_46] : memref<8x64xf32, #tpu.memory_space<vmem>>, vector<8x64xf32>
    %c0_47 = arith.constant 0 : index
    %c0_48 = arith.constant 0 : index
    %105 = vector.load %arg15[%c0_47, %c0_48] : memref<8x64xf32, #tpu.memory_space<vmem>>, vector<8x64xf32>
    %c0_49 = arith.constant 0 : index
    %c0_50 = arith.constant 0 : index
    %106 = vector.load %arg16[%c0_49, %c0_50] : memref<8x32xf32, #tpu.memory_space<vmem>>, vector<8x32xf32>
    %c0_51 = arith.constant 0 : index
    %c0_52 = arith.constant 0 : index
    %107 = vector.load %arg17[%c0_51, %c0_52] : memref<8x32xf32, #tpu.memory_space<vmem>>, vector<8x32xf32>
    %108 = vector.shape_cast %104 : vector<8x64xf32> to vector<8x1x64xf32>
    %109 = vector.shape_cast %86 : vector<16x64xf32> to vector<1x16x64xf32>
    %110 = vector.broadcast %108 : vector<8x1x64xf32> to vector<8x16x64xf32>
    %111 = vector.broadcast %109 : vector<1x16x64xf32> to vector<8x16x64xf32>
    %112 = arith.mulf %110, %111 : vector<8x16x64xf32>
    %113 = math.exp %112 : vector<8x16x64xf32>
    %114 = vector.extract_strided_slice %105 {offsets = [0, 0], sizes = [8, 32], strides = [1, 1]} : vector<8x64xf32> to vector<8x32xf32>
    %115 = vector.shape_cast %114 : vector<8x32xf32> to vector<8x1x32xf32>
    %116 = vector.extract_strided_slice %106 {offsets = [0, 0], sizes = [8, 16], strides = [1, 1]} : vector<8x32xf32> to vector<8x16xf32>
    %117 = vector.shape_cast %116 : vector<8x16xf32> to vector<8x16x1xf32>
    %118 = vector.broadcast %115 : vector<8x1x32xf32> to vector<8x16x32xf32>
    %119 = vector.broadcast %117 : vector<8x16x1xf32> to vector<8x16x32xf32>
    %120 = arith.mulf %118, %119 : vector<8x16x32xf32>
    %121 = vector.extract_strided_slice %105 {offsets = [0, 32], sizes = [8, 32], strides = [1, 1]} : vector<8x64xf32> to vector<8x32xf32>
    %122 = vector.shape_cast %121 : vector<8x32xf32> to vector<8x1x32xf32>
    %123 = vector.extract_strided_slice %106 {offsets = [0, 16], sizes = [8, 16], strides = [1, 1]} : vector<8x32xf32> to vector<8x16xf32>
    %124 = vector.shape_cast %123 : vector<8x16xf32> to vector<8x16x1xf32>
    %125 = vector.broadcast %122 : vector<8x1x32xf32> to vector<8x16x32xf32>
    %126 = vector.broadcast %124 : vector<8x16x1xf32> to vector<8x16x32xf32>
    %127 = arith.mulf %125, %126 : vector<8x16x32xf32>
    %128 = tpu.concatenate %120, %127 in 2 : vector<8x16x32xf32>, vector<8x16x32xf32> -> vector<8x16x64xf32>
    %129 = vector.extract_strided_slice %107 {offsets = [0, 0], sizes = [8, 16], strides = [1, 1]} : vector<8x32xf32> to vector<8x16xf32>
    %130 = vector.shape_cast %129 : vector<8x16xf32> to vector<8x16x1xf32>
    %131 = vector.shape_cast %130 : vector<8x16x1xf32> to vector<8x16x1xf32>
    %132 = vector.broadcast %131 : vector<8x16x1xf32> to vector<8x16x32xf32>
    %133 = vector.extract_strided_slice %107 {offsets = [0, 16], sizes = [8, 16], strides = [1, 1]} : vector<8x32xf32> to vector<8x16xf32>
    %134 = vector.shape_cast %133 : vector<8x16xf32> to vector<8x16x1xf32>
    %135 = vector.shape_cast %134 : vector<8x16x1xf32> to vector<8x16x1xf32>
    %136 = vector.broadcast %135 : vector<8x16x1xf32> to vector<8x16x32xf32>
    %137 = tpu.concatenate %132, %136 in 2 : vector<8x16x32xf32>, vector<8x16x32xf32> -> vector<8x16x64xf32>
    %138 = vector.extract_strided_slice %113 {offsets = [0, 0, 0], sizes = [1, 16, 64], strides = [1, 1, 1]} : vector<8x16x64xf32> to vector<1x16x64xf32>
    %139 = vector.shape_cast %138 : vector<1x16x64xf32> to vector<16x64xf32>
    %140 = arith.mulf %139, %103 : vector<16x64xf32>
    %141 = vector.extract_strided_slice %128 {offsets = [0, 0, 0], sizes = [1, 16, 64], strides = [1, 1, 1]} : vector<8x16x64xf32> to vector<1x16x64xf32>
    %142 = vector.shape_cast %141 : vector<1x16x64xf32> to vector<16x64xf32>
    %143 = arith.addf %140, %142 : vector<16x64xf32>
    %144 = vector.extract_strided_slice %137 {offsets = [0, 0, 0], sizes = [1, 16, 64], strides = [1, 1, 1]} : vector<8x16x64xf32> to vector<1x16x64xf32>
    %145 = vector.shape_cast %144 : vector<1x16x64xf32> to vector<16x64xf32>
    %146 = arith.mulf %143, %145 : vector<16x64xf32>
    %cst_53 = arith.constant dense<0.000000e+00> : vector<64xf32>
    %147 = vector.multi_reduction <add>, %146, %cst_53 [0] : vector<16x64xf32> to vector<64xf32>
    %148 = vector.shape_cast %147 : vector<64xf32> to vector<1x64xf32>
    %149 = vector.extract_strided_slice %113 {offsets = [1, 0, 0], sizes = [1, 16, 64], strides = [1, 1, 1]} : vector<8x16x64xf32> to vector<1x16x64xf32>
    %150 = vector.shape_cast %149 : vector<1x16x64xf32> to vector<16x64xf32>
    %151 = arith.mulf %150, %143 : vector<16x64xf32>
    %152 = vector.extract_strided_slice %128 {offsets = [1, 0, 0], sizes = [1, 16, 64], strides = [1, 1, 1]} : vector<8x16x64xf32> to vector<1x16x64xf32>
    %153 = vector.shape_cast %152 : vector<1x16x64xf32> to vector<16x64xf32>
    %154 = arith.addf %151, %153 : vector<16x64xf32>
    %155 = vector.extract_strided_slice %137 {offsets = [1, 0, 0], sizes = [1, 16, 64], strides = [1, 1, 1]} : vector<8x16x64xf32> to vector<1x16x64xf32>
    %156 = vector.shape_cast %155 : vector<1x16x64xf32> to vector<16x64xf32>
    %157 = arith.mulf %154, %156 : vector<16x64xf32>
    %cst_54 = arith.constant dense<0.000000e+00> : vector<64xf32>
    %158 = vector.multi_reduction <add>, %157, %cst_54 [0] : vector<16x64xf32> to vector<64xf32>
    %159 = vector.shape_cast %158 : vector<64xf32> to vector<1x64xf32>
    %160 = vector.extract_strided_slice %113 {offsets = [2, 0, 0], sizes = [1, 16, 64], strides = [1, 1, 1]} : vector<8x16x64xf32> to vector<1x16x64xf32>
    %161 = vector.shape_cast %160 : vector<1x16x64xf32> to vector<16x64xf32>
    %162 = arith.mulf %161, %154 : vector<16x64xf32>
    %163 = vector.extract_strided_slice %128 {offsets = [2, 0, 0], sizes = [1, 16, 64], strides = [1, 1, 1]} : vector<8x16x64xf32> to vector<1x16x64xf32>
    %164 = vector.shape_cast %163 : vector<1x16x64xf32> to vector<16x64xf32>
    %165 = arith.addf %162, %164 : vector<16x64xf32>
    %166 = vector.extract_strided_slice %137 {offsets = [2, 0, 0], sizes = [1, 16, 64], strides = [1, 1, 1]} : vector<8x16x64xf32> to vector<1x16x64xf32>
    %167 = vector.shape_cast %166 : vector<1x16x64xf32> to vector<16x64xf32>
    %168 = arith.mulf %165, %167 : vector<16x64xf32>
    %cst_55 = arith.constant dense<0.000000e+00> : vector<64xf32>
    %169 = vector.multi_reduction <add>, %168, %cst_55 [0] : vector<16x64xf32> to vector<64xf32>
    %170 = vector.shape_cast %169 : vector<64xf32> to vector<1x64xf32>
    %171 = vector.extract_strided_slice %113 {offsets = [3, 0, 0], sizes = [1, 16, 64], strides = [1, 1, 1]} : vector<8x16x64xf32> to vector<1x16x64xf32>
    %172 = vector.shape_cast %171 : vector<1x16x64xf32> to vector<16x64xf32>
    %173 = arith.mulf %172, %165 : vector<16x64xf32>
    %174 = vector.extract_strided_slice %128 {offsets = [3, 0, 0], sizes = [1, 16, 64], strides = [1, 1, 1]} : vector<8x16x64xf32> to vector<1x16x64xf32>
    %175 = vector.shape_cast %174 : vector<1x16x64xf32> to vector<16x64xf32>
    %176 = arith.addf %173, %175 : vector<16x64xf32>
    %177 = vector.extract_strided_slice %137 {offsets = [3, 0, 0], sizes = [1, 16, 64], strides = [1, 1, 1]} : vector<8x16x64xf32> to vector<1x16x64xf32>
    %178 = vector.shape_cast %177 : vector<1x16x64xf32> to vector<16x64xf32>
    %179 = arith.mulf %176, %178 : vector<16x64xf32>
    %cst_56 = arith.constant dense<0.000000e+00> : vector<64xf32>
    %180 = vector.multi_reduction <add>, %179, %cst_56 [0] : vector<16x64xf32> to vector<64xf32>
    %181 = vector.shape_cast %180 : vector<64xf32> to vector<1x64xf32>
    %182 = vector.extract_strided_slice %113 {offsets = [4, 0, 0], sizes = [1, 16, 64], strides = [1, 1, 1]} : vector<8x16x64xf32> to vector<1x16x64xf32>
    %183 = vector.shape_cast %182 : vector<1x16x64xf32> to vector<16x64xf32>
    %184 = arith.mulf %183, %176 : vector<16x64xf32>
    %185 = vector.extract_strided_slice %128 {offsets = [4, 0, 0], sizes = [1, 16, 64], strides = [1, 1, 1]} : vector<8x16x64xf32> to vector<1x16x64xf32>
    %186 = vector.shape_cast %185 : vector<1x16x64xf32> to vector<16x64xf32>
    %187 = arith.addf %184, %186 : vector<16x64xf32>
    %188 = vector.extract_strided_slice %137 {offsets = [4, 0, 0], sizes = [1, 16, 64], strides = [1, 1, 1]} : vector<8x16x64xf32> to vector<1x16x64xf32>
    %189 = vector.shape_cast %188 : vector<1x16x64xf32> to vector<16x64xf32>
    %190 = arith.mulf %187, %189 : vector<16x64xf32>
    %cst_57 = arith.constant dense<0.000000e+00> : vector<64xf32>
    %191 = vector.multi_reduction <add>, %190, %cst_57 [0] : vector<16x64xf32> to vector<64xf32>
    %192 = vector.shape_cast %191 : vector<64xf32> to vector<1x64xf32>
    %193 = vector.extract_strided_slice %113 {offsets = [5, 0, 0], sizes = [1, 16, 64], strides = [1, 1, 1]} : vector<8x16x64xf32> to vector<1x16x64xf32>
    %194 = vector.shape_cast %193 : vector<1x16x64xf32> to vector<16x64xf32>
    %195 = arith.mulf %194, %187 : vector<16x64xf32>
    %196 = vector.extract_strided_slice %128 {offsets = [5, 0, 0], sizes = [1, 16, 64], strides = [1, 1, 1]} : vector<8x16x64xf32> to vector<1x16x64xf32>
    %197 = vector.shape_cast %196 : vector<1x16x64xf32> to vector<16x64xf32>
    %198 = arith.addf %195, %197 : vector<16x64xf32>
    %199 = vector.extract_strided_slice %137 {offsets = [5, 0, 0], sizes = [1, 16, 64], strides = [1, 1, 1]} : vector<8x16x64xf32> to vector<1x16x64xf32>
    %200 = vector.shape_cast %199 : vector<1x16x64xf32> to vector<16x64xf32>
    %201 = arith.mulf %198, %200 : vector<16x64xf32>
    %cst_58 = arith.constant dense<0.000000e+00> : vector<64xf32>
    %202 = vector.multi_reduction <add>, %201, %cst_58 [0] : vector<16x64xf32> to vector<64xf32>
    %203 = vector.shape_cast %202 : vector<64xf32> to vector<1x64xf32>
    %204 = vector.extract_strided_slice %113 {offsets = [6, 0, 0], sizes = [1, 16, 64], strides = [1, 1, 1]} : vector<8x16x64xf32> to vector<1x16x64xf32>
    %205 = vector.shape_cast %204 : vector<1x16x64xf32> to vector<16x64xf32>
    %206 = arith.mulf %205, %198 : vector<16x64xf32>
    %207 = vector.extract_strided_slice %128 {offsets = [6, 0, 0], sizes = [1, 16, 64], strides = [1, 1, 1]} : vector<8x16x64xf32> to vector<1x16x64xf32>
    %208 = vector.shape_cast %207 : vector<1x16x64xf32> to vector<16x64xf32>
    %209 = arith.addf %206, %208 : vector<16x64xf32>
    %210 = vector.extract_strided_slice %137 {offsets = [6, 0, 0], sizes = [1, 16, 64], strides = [1, 1, 1]} : vector<8x16x64xf32> to vector<1x16x64xf32>
    %211 = vector.shape_cast %210 : vector<1x16x64xf32> to vector<16x64xf32>
    %212 = arith.mulf %209, %211 : vector<16x64xf32>
    %cst_59 = arith.constant dense<0.000000e+00> : vector<64xf32>
    %213 = vector.multi_reduction <add>, %212, %cst_59 [0] : vector<16x64xf32> to vector<64xf32>
    %214 = vector.shape_cast %213 : vector<64xf32> to vector<1x64xf32>
    %215 = vector.extract_strided_slice %113 {offsets = [7, 0, 0], sizes = [1, 16, 64], strides = [1, 1, 1]} : vector<8x16x64xf32> to vector<1x16x64xf32>
    %216 = vector.shape_cast %215 : vector<1x16x64xf32> to vector<16x64xf32>
    %217 = arith.mulf %216, %209 : vector<16x64xf32>
    %218 = vector.extract_strided_slice %128 {offsets = [7, 0, 0], sizes = [1, 16, 64], strides = [1, 1, 1]} : vector<8x16x64xf32> to vector<1x16x64xf32>
    %219 = vector.shape_cast %218 : vector<1x16x64xf32> to vector<16x64xf32>
    %220 = arith.addf %217, %219 : vector<16x64xf32>
    %221 = vector.extract_strided_slice %137 {offsets = [7, 0, 0], sizes = [1, 16, 64], strides = [1, 1, 1]} : vector<8x16x64xf32> to vector<1x16x64xf32>
    %222 = vector.shape_cast %221 : vector<1x16x64xf32> to vector<16x64xf32>
    %223 = arith.mulf %220, %222 : vector<16x64xf32>
    %cst_60 = arith.constant dense<0.000000e+00> : vector<64xf32>
    %224 = vector.multi_reduction <add>, %223, %cst_60 [0] : vector<16x64xf32> to vector<64xf32>
    %225 = vector.shape_cast %224 : vector<64xf32> to vector<1x64xf32>
    %226 = tpu.concatenate %148, %159, %170, %181, %192, %203, %214, %225 in 0 : vector<1x64xf32>, vector<1x64xf32>, vector<1x64xf32>, vector<1x64xf32>, vector<1x64xf32>, vector<1x64xf32>, vector<1x64xf32>, vector<1x64xf32> -> vector<8x64xf32>
    %c0_61 = arith.constant 0 : index
    %c0_62 = arith.constant 0 : index
    %227 = vector.load %arg18[%c0_61, %c0_62] : memref<8x64xf32, #tpu.memory_space<vmem>>, vector<8x64xf32>
    tpu.vector_store %arg18[%c0_61, %c0_62], %226 {strides = array<i32>} : memref<8x64xf32, #tpu.memory_space<vmem>>, vector<8x64xf32>,
    %c0_63 = arith.constant 0 : index
    %c0_64 = arith.constant 0 : index
    %228 = vector.load %arg18[%c0_63, %c0_64] : memref<8x64xf32, #tpu.memory_space<vmem>>, vector<8x64xf32>
    %229 = vector.extract_strided_slice %228 {offsets = [0, 0], sizes = [8, 32], strides = [1, 1]} : vector<8x64xf32> to vector<8x32xf32>
    %230 = vector.extract_strided_slice %228 {offsets = [0, 32], sizes = [8, 32], strides = [1, 1]} : vector<8x64xf32> to vector<8x32xf32>
    %231 = arith.addf %229, %230 : vector<8x32xf32>
    %c0_65 = arith.constant 0 : index
    %c0_66 = arith.constant 0 : index
    %232 = vector.load %arg12[%c0_65, %c0_66] : memref<1x32xf32, #tpu.memory_space<vmem>>, vector<1x32xf32>
    %233 = vector.extract_strided_slice %55 {offsets = [0, 0], sizes = [8, 32], strides = [1, 1]} : vector<8x64xf32> to vector<8x32xf32>
    %234 = vector.extract_strided_slice %55 {offsets = [0, 32], sizes = [8, 32], strides = [1, 1]} : vector<8x64xf32> to vector<8x32xf32>
    %235 = arith.addf %233, %234 : vector<8x32xf32>
    %236 = vector.broadcast %232 : vector<1x32xf32> to vector<8x32xf32>
    %237 = arith.mulf %236, %235 : vector<8x32xf32>
    %238 = arith.addf %231, %237 : vector<8x32xf32>
    %239 = arith.mulf %238, %36 : vector<8x32xf32>
    %240 = arith.addf %239, %1 : vector<8x32xf32>
    %241 = vector.shape_cast %240 : vector<8x32xf32> to vector<1x8x32xf32>
    %c0_67 = arith.constant 0 : index
    %c0_68 = arith.constant 0 : index
    %c0_69 = arith.constant 0 : index
    %242 = vector.load %arg13[%c0_67, %c0_68, %c0_69] : memref<1x8x32xf32, #tpu.memory_space<vmem>>, vector<1x8x32xf32>
    tpu.vector_store %arg13[%c0_67, %c0_68, %c0_69], %241 {strides = array<i32>} : memref<1x8x32xf32, #tpu.memory_space<vmem>>, vector<1x8x32xf32>,
    return
  }
  func.func @transform_0(%arg0: i32) -> (i32, i32, i32) {
    %c0_i32 = arith.constant 0 : i32
    %c0_i32_0 = arith.constant 0 : i32
    %c0_i32_1 = arith.constant 0 : i32
    return %arg0, %c0_i32, %c0_i32_0 : i32, i32, i32
  }
  func.func @transform_1(%arg0: i32) -> (i32, i32) {
    %c0_i32 = arith.constant 0 : i32
    %c0_i32_0 = arith.constant 0 : i32
    %c0_i32_1 = arith.constant 0 : i32
    return %c0_i32, %c0_i32_0 : i32, i32
  }
  func.func @transform_2(%arg0: i32) -> (i32, i32) {
    %c0_i32 = arith.constant 0 : i32
    %c0_i32_0 = arith.constant 0 : i32
    %c0_i32_1 = arith.constant 0 : i32
    return %c0_i32, %c0_i32_0 : i32, i32
  }
  func.func @transform_3(%arg0: i32) -> (i32, i32) {
    %c0_i32 = arith.constant 0 : i32
    %c0_i32_0 = arith.constant 0 : i32
    %c0_i32_1 = arith.constant 0 : i32
    return %c0_i32, %c0_i32_0 : i32, i32
  }
  func.func @transform_4(%arg0: i32) -> (i32, i32) {
    %c0_i32 = arith.constant 0 : i32
    %c0_i32_0 = arith.constant 0 : i32
    %c0_i32_1 = arith.constant 0 : i32
    return %c0_i32, %c0_i32_0 : i32, i32
  }
  func.func @transform_5(%arg0: i32) -> (i32, i32) {
    %c0_i32 = arith.constant 0 : i32
    %c0_i32_0 = arith.constant 0 : i32
    %c0_i32_1 = arith.constant 0 : i32
    return %c0_i32, %c0_i32_0 : i32, i32
  }
  func.func @transform_6(%arg0: i32) -> (i32, i32) {
    %c0_i32 = arith.constant 0 : i32
    %c0_i32_0 = arith.constant 0 : i32
    %c0_i32_1 = arith.constant 0 : i32
    return %c0_i32, %c0_i32_0 : i32, i32
  }
  func.func @transform_7(%arg0: i32) -> (i32, i32) {
    %c0_i32 = arith.constant 0 : i32
    %c0_i32_0 = arith.constant 0 : i32
    %c0_i32_1 = arith.constant 0 : i32
    return %c0_i32, %c0_i32_0 : i32, i32
  }
  func.func @transform_8(%arg0: i32) -> (i32, i32) {
    %c0_i32 = arith.constant 0 : i32
    %c0_i32_0 = arith.constant 0 : i32
    %c0_i32_1 = arith.constant 0 : i32
    return %c0_i32, %c0_i32_0 : i32, i32
  }
  func.func @transform_9(%arg0: i32) -> (i32, i32) {
    %c0_i32 = arith.constant 0 : i32
    %c0_i32_0 = arith.constant 0 : i32
    %c0_i32_1 = arith.constant 0 : i32
    return %c0_i32, %c0_i32_0 : i32, i32
  }
  func.func @transform_10(%arg0: i32) -> (i32, i32) {
    %c0_i32 = arith.constant 0 : i32
    %c0_i32_0 = arith.constant 0 : i32
    %c0_i32_1 = arith.constant 0 : i32
    return %c0_i32, %c0_i32_0 : i32, i32
  }
  func.func @transform_11(%arg0: i32) -> (i32, i32) {
    %c0_i32 = arith.constant 0 : i32
    %c0_i32_0 = arith.constant 0 : i32
    %c0_i32_1 = arith.constant 0 : i32
    return %c0_i32, %c0_i32_0 : i32, i32
  }
  func.func @transform_12(%arg0: i32) -> (i32, i32, i32) {
    %c0_i32 = arith.constant 0 : i32
    %c0_i32_0 = arith.constant 0 : i32
    %c0_i32_1 = arith.constant 0 : i32
    return %arg0, %c0_i32, %c0_i32_0 : i32, i32, i32
  }
}

</mosaic_0001>

<llo_original>
// kernel: tpu_custom_call.1
$region0: #{tpu_custom_call.1}
  #allocation0 [shape = 'u32[]', space=smem, size = 0x4, offset = 0x4, fixed_abs, tag = 'smem constant byte address 0x4 - core index']
  #allocation1 [shape = 'u32[72,128]{1,0:T(1,128)}', space=vmem, size = 0x9000, scoped, tag = 'internal scratch']
  #allocation2 [shape = 'f32[8,64]{1,0:T(8,128)}', space=vmem, size = 0x1000, scoped, tag = 'scratch operand']
  #allocation3 [shape = 'f32[8,64]{1,0:T(8,128)}', space=vmem, size = 0x1000, scoped, tag = 'scratch operand']
  #allocation4 [shape = 'f32[8,32]{1,0:T(8,128)}', space=vmem, size = 0x1000, scoped, tag = 'scratch operand']
  #allocation5 [shape = 'f32[8,32]{1,0:T(8,128)}', space=vmem, size = 0x1000, scoped, tag = 'scratch operand']
  #allocation6 [shape = 'f32[8,64]{1,0:T(8,128)}', space=vmem, size = 0x1000, scoped, tag = 'scratch operand']
  %s0 = inlined_call_operand.hbm [shape: f32[2,8,32], index: 0, kind: input, shape index: {}]
  %s1 = inlined_call_operand.hbm [shape: f32[1,32], index: 1, kind: input, shape index: {}]
  %s2 = inlined_call_operand.vmem [shape: f32[1,32], index: 2, kind: input, shape index: {}]
  %s3 = inlined_call_operand.hbm [shape: f32[32,32], index: 3, kind: input, shape index: {}]
  %s4 = inlined_call_operand.vmem [shape: f32[1,32], index: 4, kind: input, shape index: {}]
  %s5 = inlined_call_operand.hbm [shape: f32[32,64], index: 5, kind: input, shape index: {}]
  %s6 = inlined_call_operand.vmem [shape: f32[1,64], index: 6, kind: input, shape index: {}]
  %s7 = inlined_call_operand.hbm [shape: f32[32,40], index: 7, kind: input, shape index: {}]
  %s8 = inlined_call_operand.hbm [shape: f32[8,32], index: 8, kind: input, shape index: {}]
  %s9 = inlined_call_operand.vmem [shape: f32[1,32], index: 9, kind: input, shape index: {}]
  %s10 = inlined_call_operand.hbm [shape: f32[16,32], index: 10, kind: input, shape index: {}]
  %s11 = inlined_call_operand.vmem [shape: f32[1,32], index: 11, kind: input, shape index: {}]
  %s12 = inlined_call_operand.hbm [shape: f32[2,8,32], index: 12, kind: output, shape index: {}]
  %s13 = sld [smem:[#allocation0]]
  $region109: #{tpu_custom_call.1} parent=0
    _
  %s15 = ssub.s32 1, %s13
  %s16 = scalar_select 0, %s15, %s13
  $region1: #{tpu_custom_call.1} parent=0
    #allocation7 [shape = 'u8[8192]{0}', space=vmem, size = 0x2000, scoped, tag = 'input window, operand 0']
    #allocation8 [shape = 's32[2]{0}', space=sflag, size = 0x8, scoped, tag = 'scoped memory for tpu_custom_call.1']
    #allocation9 [shape = 's32[2]{0}', space=sflag, size = 0x8, scoped, tag = 'scoped memory for tpu_custom_call.1']
    #allocation10 [shape = 'u8[512]{0}', space=vmem, size = 0x400, scoped, tag = 'input window, operand 1, single buffered']
    #allocation11 [shape = 's32[1]{0}', space=sflag, size = 0x4, scoped, tag = 'scoped memory for tpu_custom_call.1']
    #allocation12 [shape = 'u8[16384]{0}', space=vmem, size = 0x4000, scoped, tag = 'input window, operand 3, single buffered']
    #allocation13 [shape = 'u8[16384]{0}', space=vmem, size = 0x4000, scoped, tag = 'input window, operand 5, single buffered']
    #allocation14 [shape = 's32[1]{0}', space=sflag, size = 0x4, scoped, tag = 'scoped memory for tpu_custom_call.1']
    #allocation15 [shape = 'u8[16384]{0}', space=vmem, size = 0x4000, scoped, tag = 'input window, operand 7, single buffered']
    #allocation16 [shape = 'u8[4096]{0}', space=vmem, size = 0x1000, scoped, tag = 'input window, operand 8, single buffered']
    #allocation17 [shape = 's32[1]{0}', space=sflag, size = 0x4, scoped, tag = 'scoped memory for tpu_custom_call.1']
    #allocation18 [shape = 'u8[8192]{0}', space=vmem, size = 0x2000, scoped, tag = 'input window, operand 10, single buffered']
    #allocation19 [shape = 'u8[8192]{0}', space=vmem, size = 0x2000, scoped, tag = 'output window, operand 0']
    %17 = vsyncpa [#allocation8], 0
    %s18 = scalar_lea.sflag [#allocation8], 1
    %19 = vsyncpa %s18, 0
    %20 = vsyncpa [#allocation11], 0
    %21 = vsyncpa [#allocation14], 0
    %22 = vsyncpa [#allocation17], 0
    %23 = vsyncpa [#allocation9], 0
    %s24 = scalar_lea.sflag [#allocation9], 1
    %25 = vsyncpa %s24, 0
    loop: start=0, step=1, limit=4
    $region2: #{tpu_custom_call.1} parent=1 // loop_pre_header
      _
    $region3: #{tpu_custom_call.1} parent=1 // loop_header
      %s27 = sphi 0, %s31
      %p28 = scmp.ge.s32.totalorder %s27, 4
      %s37 = sphi 0, %s39
      %s40 = sphi 0, %s37
      %s41 = sphi 0, %s40
      %s57 = sphi 0, %s41
      %s61 = sphi 0, %s61
      %s63 = sphi 0, %s61
      %s64 = sphi 0, %s63
      %s78 = sphi 0, %s64
      %s82 = sphi 0, %s82
      %s84 = sphi 0, %s82
      %s85 = sphi 0, %s84
      %s99 = sphi 0, %s85
      %s103 = sphi 0, %s103
      %s105 = sphi 0, %s103
      %s106 = sphi 0, %s105
      %s120 = sphi 0, %s106
      %s124 = sphi 0, %s124
      %s126 = sphi 0, %s124
      %s127 = sphi 0, %s126
      %s141 = sphi 0, %s127
      %s145 = sphi 0, %s145
      %s147 = sphi 0, %s145
      %s148 = sphi 0, %s147
      %s162 = sphi 0, %s148
      %s166 = sphi 0, %s166
      %s168 = sphi 0, %s166
      %s169 = sphi 0, %s168
      %s183 = sphi 0, %s169
      %s187 = sphi 0, %s187
      %s189 = sphi 0, %s187
      %s190 = sphi 0, %s189
      %s204 = sphi 0, %s190
      %s208 = sphi 0, %s208
      %s210 = sphi 0, %s208
      %s211 = sphi 0, %s210
      %s225 = sphi 0, %s211
      %s229 = sphi 0, %s229
      %s231 = sphi 0, %s229
      %s232 = sphi 0, %s231
      %s246 = sphi 0, %s232
      %s250 = sphi 0, %s250
      %s252 = sphi 0, %s250
      %s253 = sphi 0, %s252
      %s267 = sphi 0, %s253
      %s271 = sphi 0, %s271
      %s273 = sphi 0, %s271
      %s274 = sphi 0, %s273
      %s288 = sphi 0, %s274
      %s294 = sphi 0, %s296
      %s297 = sphi 0, %s294
      %s298 = sphi 0, %s297
      %s314 = sphi 0, %s298
    $region4: #{tpu_custom_call.1} parent=1 // loop_header_branch
      %30 = sbr.rel (%p28) target = $region8
    $region5: #{tpu_custom_call.1} parent=1 // loop_body
      %s32 = ssub.s32 %s27, 1
      %s33 = ssub.s32 %s27, 2
      %s34 = sadd.s32 %s27, 1
      %s35 = ssub.s32 %s27, %s34
      %p36 = scmp.eq.s32.totalorder %s35, 0
      %s38 = sadd.s32 %s37, 1
      %s39 = scalar_select %p36, %s37, %s38
      %p42 = pneg %p36
      %p43 = scmp.eq.s32.totalorder %s27, 1
      %p44 = por %p42, %p43
      %p45 = scmp.ne.s32.totalorder %s37, %s40
      %p46 = scmp.eq.s32.totalorder %s27, 0
      %p47 = por %p45, %p46
      %p48 = scmp.ne.s32.totalorder %s37, %s40
      %p49 = scmp.eq.s32.totalorder %s32, 1
      %p50 = por %p48, %p49
      %p51 = scmp.ne.s32.totalorder %s40, %s41
      %p52 = scmp.eq.s32.totalorder %s32, 0
      %p53 = por %p51, %p52
      %p54 = scmp.ne.s32.totalorder %s40, %s41
      %p55 = scmp.eq.s32.totalorder %s33, 1
      %p56 = por %p54, %p55
      %p58 = scmp.ne.s32.totalorder %s41, %s57
      %p59 = scmp.eq.s32.totalorder %s33, 0
      %p60 = por %p58, %p59
      %s62 = sadd.s32 %s61, 1
      %p65 = scmp.eq.s32.totalorder %s27, 1
      %p66 = scmp.ne.s32.totalorder %s61, %s63
      %p67 = scmp.eq.s32.totalorder %s27, 0
      %p68 = por %p66, %p67
      %p69 = scmp.ne.s32.totalorder %s61, %s63
      %p70 = scmp.eq.s32.totalorder %s32, 1
      %p71 = por %p69, %p70
      %p72 = scmp.ne.s32.totalorder %s63, %s64
      %p73 = scmp.eq.s32.totalorder %s32, 0
      %p74 = por %p72, %p73
      %p75 = scmp.ne.s32.totalorder %s63, %s64
      %p76 = scmp.eq.s32.totalorder %s33, 1
      %p77 = por %p75, %p76
      %p79 = scmp.ne.s32.totalorder %s64, %s78
      %p80 = scmp.eq.s32.totalorder %s33, 0
      %p81 = por %p79, %p80
      %s83 = sadd.s32 %s82, 1
      %p86 = scmp.eq.s32.totalorder %s27, 1
      %p87 = scmp.ne.s32.totalorder %s82, %s84
      %p88 = scmp.eq.s32.totalorder %s27, 0
      %p89 = por %p87, %p88
      %p90 = scmp.ne.s32.totalorder %s82, %s84
      %p91 = scmp.eq.s32.totalorder %s32, 1
      %p92 = por %p90, %p91
      %p93 = scmp.ne.s32.totalorder %s84, %s85
      %p94 = scmp.eq.s32.totalorder %s32, 0
      %p95 = por %p93, %p94
      %p96 = scmp.ne.s32.totalorder %s84, %s85
      %p97 = scmp.eq.s32.totalorder %s33, 1
      %p98 = por %p96, %p97
      %p100 = scmp.ne.s32.totalorder %s85, %s99
      %p101 = scmp.eq.s32.totalorder %s33, 0
      %p102 = por %p100, %p101
      %s104 = sadd.s32 %s103, 1
      %p107 = scmp.eq.s32.totalorder %s27, 1
      %p108 = scmp.ne.s32.totalorder %s103, %s105
      %p109 = scmp.eq.s32.totalorder %s27, 0
      %p110 = por %p108, %p109
      %p111 = scmp.ne.s32.totalorder %s103, %s105
      %p112 = scmp.eq.s32.totalorder %s32, 1
      %p113 = por %p111, %p112
      %p114 = scmp.ne.s32.totalorder %s105, %s106
      %p115 = scmp.eq.s32.totalorder %s32, 0
      %p116 = por %p114, %p115
      %p117 = scmp.ne.s32.totalorder %s105, %s106
      %p118 = scmp.eq.s32.totalorder %s33, 1
      %p119 = por %p117, %p118
      %p121 = scmp.ne.s32.totalorder %s106, %s120
      %p122 = scmp.eq.s32.totalorder %s33, 0
      %p123 = por %p121, %p122
      %s125 = sadd.s32 %s124, 1
      %p128 = scmp.eq.s32.totalorder %s27, 1
      %p129 = scmp.ne.s32.totalorder %s124, %s126
      %p130 = scmp.eq.s32.totalorder %s27, 0
      %p131 = por %p129, %p130
      %p132 = scmp.ne.s32.totalorder %s124, %s126
      %p133 = scmp.eq.s32.totalorder %s32, 1
      %p134 = por %p132, %p133
      %p135 = scmp.ne.s32.totalorder %s126, %s127
      %p136 = scmp.eq.s32.totalorder %s32, 0
      %p137 = por %p135, %p136
      %p138 = scmp.ne.s32.totalorder %s126, %s127
      %p139 = scmp.eq.s32.totalorder %s33, 1
      %p140 = por %p138, %p139
      %p142 = scmp.ne.s32.totalorder %s127, %s141
      %p143 = scmp.eq.s32.totalorder %s33, 0
      %p144 = por %p142, %p143
      %s146 = sadd.s32 %s145, 1
      %p149 = scmp.eq.s32.totalorder %s27, 1
      %p150 = scmp.ne.s32.totalorder %s145, %s147
      %p151 = scmp.eq.s32.totalorder %s27, 0
      %p152 = por %p150, %p151
      %p153 = scmp.ne.s32.totalorder %s145, %s147
      %p154 = scmp.eq.s32.totalorder %s32, 1
      %p155 = por %p153, %p154
      %p156 = scmp.ne.s32.totalorder %s147, %s148
      %p157 = scmp.eq.s32.totalorder %s32, 0
      %p158 = por %p156, %p157
      %p159 = scmp.ne.s32.totalorder %s147, %s148
      %p160 = scmp.eq.s32.totalorder %s33, 1
      %p161 = por %p159, %p160
      %p163 = scmp.ne.s32.totalorder %s148, %s162
      %p164 = scmp.eq.s32.totalorder %s33, 0
      %p165 = por %p163, %p164
      %s167 = sadd.s32 %s166, 1
      %p170 = scmp.eq.s32.totalorder %s27, 1
      %p171 = scmp.ne.s32.totalorder %s166, %s168
      %p172 = scmp.eq.s32.totalorder %s27, 0
      %p173 = por %p171, %p172
      %p174 = scmp.ne.s32.totalorder %s166, %s168
      %p175 = scmp.eq.s32.totalorder %s32, 1
      %p176 = por %p174, %p175
      %p177 = scmp.ne.s32.totalorder %s168, %s169
      %p178 = scmp.eq.s32.totalorder %s32, 0
      %p179 = por %p177, %p178
      %p180 = scmp.ne.s32.totalorder %s168, %s169
      %p181 = scmp.eq.s32.totalorder %s33, 1
      %p182 = por %p180, %p181
      %p184 = scmp.ne.s32.totalorder %s169, %s183
      %p185 = scmp.eq.s32.totalorder %s33, 0
      %p186 = por %p184, %p185
      %s188 = sadd.s32 %s187, 1
      %p191 = scmp.eq.s32.totalorder %s27, 1
      %p192 = scmp.ne.s32.totalorder %s187, %s189
      %p193 = scmp.eq.s32.totalorder %s27, 0
      %p194 = por %p192, %p193
      %p195 = scmp.ne.s32.totalorder %s187, %s189
      %p196 = scmp.eq.s32.totalorder %s32, 1
      %p197 = por %p195, %p196
      %p198 = scmp.ne.s32.totalorder %s189, %s190
      %p199 = scmp.eq.s32.totalorder %s32, 0
      %p200 = por %p198, %p199
      %p201 = scmp.ne.s32.totalorder %s189, %s190
      %p202 = scmp.eq.s32.totalorder %s33, 1
      %p203 = por %p201, %p202
      %p205 = scmp.ne.s32.totalorder %s190, %s204
      %p206 = scmp.eq.s32.totalorder %s33, 0
      %p207 = por %p205, %p206
      %s209 = sadd.s32 %s208, 1
      %p212 = scmp.eq.s32.totalorder %s27, 1
      %p213 = scmp.ne.s32.totalorder %s208, %s210
      %p214 = scmp.eq.s32.totalorder %s27, 0
      %p215 = por %p213, %p214
      %p216 = scmp.ne.s32.totalorder %s208, %s210
      %p217 = scmp.eq.s32.totalorder %s32, 1
      %p218 = por %p216, %p217
      %p219 = scmp.ne.s32.totalorder %s210, %s211
      %p220 = scmp.eq.s32.totalorder %s32, 0
      %p221 = por %p219, %p220
      %p222 = scmp.ne.s32.totalorder %s210, %s211
      %p223 = scmp.eq.s32.totalorder %s33, 1
      %p224 = por %p222, %p223
      %p226 = scmp.ne.s32.totalorder %s211, %s225
      %p227 = scmp.eq.s32.totalorder %s33, 0
      %p228 = por %p226, %p227
      %s230 = sadd.s32 %s229, 1
      %p233 = scmp.eq.s32.totalorder %s27, 1
      %p234 = scmp.ne.s32.totalorder %s229, %s231
      %p235 = scmp.eq.s32.totalorder %s27, 0
      %p236 = por %p234, %p235
      %p237 = scmp.ne.s32.totalorder %s229, %s231
      %p238 = scmp.eq.s32.totalorder %s32, 1
      %p239 = por %p237, %p238
      %p240 = scmp.ne.s32.totalorder %s231, %s232
      %p241 = scmp.eq.s32.totalorder %s32, 0
      %p242 = por %p240, %p241
      %p243 = scmp.ne.s32.totalorder %s231, %s232
      %p244 = scmp.eq.s32.totalorder %s33, 1
      %p245 = por %p243, %p244
      %p247 = scmp.ne.s32.totalorder %s232, %s246
      %p248 = scmp.eq.s32.totalorder %s33, 0
      %p249 = por %p247, %p248
      %s251 = sadd.s32 %s250, 1
      %p254 = scmp.eq.s32.totalorder %s27, 1
      %p255 = scmp.ne.s32.totalorder %s250, %s252
      %p256 = scmp.eq.s32.totalorder %s27, 0
      %p257 = por %p255, %p256
      %p258 = scmp.ne.s32.totalorder %s250, %s252
      %p259 = scmp.eq.s32.totalorder %s32, 1
      %p260 = por %p258, %p259
      %p261 = scmp.ne.s32.totalorder %s252, %s253
      %p262 = scmp.eq.s32.totalorder %s32, 0
      %p263 = por %p261, %p262
      %p264 = scmp.ne.s32.totalorder %s252, %s253
      %p265 = scmp.eq.s32.totalorder %s33, 1
      %p266 = por %p264, %p265
      %p268 = scmp.ne.s32.totalorder %s253, %s267
      %p269 = scmp.eq.s32.totalorder %s33, 0
      %p270 = por %p268, %p269
      %s272 = sadd.s32 %s271, 1
      %p275 = scmp.eq.s32.totalorder %s27, 1
      %p276 = scmp.ne.s32.totalorder %s271, %s273
      %p277 = scmp.eq.s32.totalorder %s27, 0
      %p278 = por %p276, %p277
      %p279 = scmp.ne.s32.totalorder %s271, %s273
      %p280 = scmp.eq.s32.totalorder %s32, 1
      %p281 = por %p279, %p280
      %p282 = scmp.ne.s32.totalorder %s273, %s274
      %p283 = scmp.eq.s32.totalorder %s32, 0
      %p284 = por %p282, %p283
      %p285 = scmp.ne.s32.totalorder %s273, %s274
      %p286 = scmp.eq.s32.totalorder %s33, 1
      %p287 = por %p285, %p286
      %p289 = scmp.ne.s32.totalorder %s274, %s288
      %p290 = scmp.eq.s32.totalorder %s33, 0
      %p291 = por %p289, %p290
      %s292 = ssub.s32 %s27, %s34
      %p293 = scmp.eq.s32.totalorder %s292, 0
      %s295 = sadd.s32 %s294, 1
      %s296 = scalar_select %p293, %s294, %s295
      %p299 = pneg %p293
      %p300 = scmp.eq.s32.totalorder %s27, 1
      %p301 = por %p299, %p300
      %p302 = scmp.ne.s32.totalorder %s294, %s297
      %p303 = scmp.eq.s32.totalorder %s27, 0
      %p304 = por %p302, %p303
      %p305 = scmp.ne.s32.totalorder %s294, %s297
      %p306 = scmp.eq.s32.totalorder %s32, 1
      %p307 = por %p305, %p306
      %p308 = scmp.ne.s32.totalorder %s297, %s298
      %p309 = scmp.eq.s32.totalorder %s32, 0
      %p310 = por %p308, %p309
      %p311 = scmp.ne.s32.totalorder %s297, %s298
      %p312 = scmp.eq.s32.totalorder %s33, 1
      %p313 = por %p311, %p312
      %p315 = scmp.ne.s32.totalorder %s298, %s314
      %p316 = scmp.eq.s32.totalorder %s33, 0
      %p317 = por %p315, %p316
      %p318 = scmp.le.s32.totalorder 1, %s27
      %p319 = scmp.lt.s32.totalorder %s27, 3
      %p320 = pnand %p318, %p319
      %p321 = pneg %p320
      // Predicated region
      $region9: #{tpu_custom_call.1} parent=5 // pred_check
        _
      $region10: #{tpu_custom_call.1} parent=5 // pred_check_branch
        %323 = sbr.rel (%p320) target = $region12
      $region11: #{tpu_custom_call.1} parent=5 // pred_region
        %s324 = ssub.s32 %s27, 1
        // Predicated region
        $region13: #{tpu_custom_call.1} parent=11 // pred_check
          %p325 = pneg %p74
        $region14: #{tpu_custom_call.1} parent=11 // pred_check_branch
          %327 = sbr.rel (%p325) target = $region16
        $region15: #{tpu_custom_call.1} parent=11 // pred_region
          %329 = vsyncadd [#allocation11], 0
          %s331 = sshll.u32 %s1, 4
          %s332 = int_to_ptr.hbm [resolvable:$true] %s331
          %s333 = sshll.u32 [#allocation10], 4
          %s334 = int_to_ptr.vmem [resolvable:$true] %s333
          %336 = dma.hbm_to_vmem [thread:$0]  %s332, 16, %s334, [#allocation11]
        $region16: #{tpu_custom_call.1} parent=11 // pred_fallthru
          _
        // Predicated region
        $region17: #{tpu_custom_call.1} parent=11 // pred_check
          %p337 = pneg %p95
        $region18: #{tpu_custom_call.1} parent=11 // pred_check_branch
          %339 = sbr.rel (%p337) target = $region20
        $region19: #{tpu_custom_call.1} parent=11 // pred_region
          _
        $region20: #{tpu_custom_call.1} parent=11 // pred_fallthru
          _
        // Predicated region
        $region21: #{tpu_custom_call.1} parent=11 // pred_check
          %p340 = pneg %p116
        $region22: #{tpu_custom_call.1} parent=11 // pred_check_branch
          %342 = sbr.rel (%p340) target = $region24
        $region23: #{tpu_custom_call.1} parent=11 // pred_region
          %344 = vsyncadd [#allocation11], 0
          %s345 = sshll.u32 %s3, 4
          %s346 = int_to_ptr.hbm [resolvable:$true] %s345
          %s347 = sshll.u32 [#allocation12], 4
          %s348 = int_to_ptr.vmem [resolvable:$true] %s347
          %353 = dma.hbm_to_vmem [thread:$0]  %s346, 512, %s348, [#allocation11], 128, 128, 8
        $region24: #{tpu_custom_call.1} parent=11 // pred_fallthru
          _
        // Predicated region
        $region25: #{tpu_custom_call.1} parent=11 // pred_check
          %p354 = pneg %p137
        $region26: #{tpu_custom_call.1} parent=11 // pred_check_branch
          %356 = sbr.rel (%p354) target = $region28
        $region27: #{tpu_custom_call.1} parent=11 // pred_region
          _
        $region28: #{tpu_custom_call.1} parent=11 // pred_fallthru
          _
        // Predicated region
        $region29: #{tpu_custom_call.1} parent=11 // pred_check
          %p357 = pneg %p158
        $region30: #{tpu_custom_call.1} parent=11 // pred_check_branch
          %359 = sbr.rel (%p357) target = $region32
        $region31: #{tpu_custom_call.1} parent=11 // pred_region
          %361 = vsyncadd [#allocation14], 0
          %s362 = sshll.u32 %s5, 4
          %s363 = int_to_ptr.hbm [resolvable:$true] %s362
          %s364 = sshll.u32 [#allocation13], 4
          %s365 = int_to_ptr.vmem [resolvable:$true] %s364
          %370 = dma.hbm_to_vmem [thread:$0]  %s363, 512, %s365, [#allocation14], 128, 128, 8
        $region32: #{tpu_custom_call.1} parent=11 // pred_fallthru
          _
        // Predicated region
        $region33: #{tpu_custom_call.1} parent=11 // pred_check
          %p371 = pneg %p179
        $region34: #{tpu_custom_call.1} parent=11 // pred_check_branch
          %373 = sbr.rel (%p371) target = $region36
        $region35: #{tpu_custom_call.1} parent=11 // pred_region
          _
        $region36: #{tpu_custom_call.1} parent=11 // pred_fallthru
          _
        // Predicated region
        $region37: #{tpu_custom_call.1} parent=11 // pred_check
          %p374 = pneg %p200
        $region38: #{tpu_custom_call.1} parent=11 // pred_check_branch
          %376 = sbr.rel (%p374) target = $region40
        $region39: #{tpu_custom_call.1} parent=11 // pred_region
          %378 = vsyncadd [#allocation14], 0
          %s379 = sshll.u32 %s7, 4
          %s380 = int_to_ptr.hbm [resolvable:$true] %s379
          %s381 = sshll.u32 [#allocation15], 4
          %s382 = int_to_ptr.vmem [resolvable:$true] %s381
          %387 = dma.hbm_to_vmem [thread:$0]  %s380, 512, %s382, [#allocation14], 128, 128, 8
        $region40: #{tpu_custom_call.1} parent=11 // pred_fallthru
          _
        // Predicated region
        $region41: #{tpu_custom_call.1} parent=11 // pred_check
          %p388 = pneg %p221
        $region42: #{tpu_custom_call.1} parent=11 // pred_check_branch
          %390 = sbr.rel (%p388) target = $region44
        $region43: #{tpu_custom_call.1} parent=11 // pred_region
          %392 = vsyncadd [#allocation17], 0
          %s394 = sshll.u32 %s8, 4
          %s395 = int_to_ptr.hbm [resolvable:$true] %s394
          %s396 = sshll.u32 [#allocation16], 4
          %s397 = int_to_ptr.vmem [resolvable:$true] %s396
          %399 = dma.hbm_to_vmem [thread:$0]  %s395, 128, %s397, [#allocation17]
        $region44: #{tpu_custom_call.1} parent=11 // pred_fallthru
          _
        // Predicated region
        $region45: #{tpu_custom_call.1} parent=11 // pred_check
          %p400 = pneg %p242
        $region46: #{tpu_custom_call.1} parent=11 // pred_check_branch
          %402 = sbr.rel (%p400) target = $region48
        $region47: #{tpu_custom_call.1} parent=11 // pred_region
          _
        $region48: #{tpu_custom_call.1} parent=11 // pred_fallthru
          _
        // Predicated region
        $region49: #{tpu_custom_call.1} parent=11 // pred_check
          %p403 = pneg %p263
        $region50: #{tpu_custom_call.1} parent=11 // pred_check_branch
          %405 = sbr.rel (%p403) target = $region52
        $region51: #{tpu_custom_call.1} parent=11 // pred_region
          %407 = vsyncadd [#allocation17], 0
          %s408 = sshll.u32 %s10, 4
          %s409 = int_to_ptr.hbm [resolvable:$true] %s408
          %s410 = sshll.u32 [#allocation18], 4
          %s411 = int_to_ptr.vmem [resolvable:$true] %s410
          %416 = dma.hbm_to_vmem [thread:$0]  %s409, 256, %s411, [#allocation17], 128, 128, 8
        $region52: #{tpu_custom_call.1} parent=11 // pred_fallthru
          _
        // Predicated region
        $region53: #{tpu_custom_call.1} parent=11 // pred_check
          %p417 = pneg %p284
        $region54: #{tpu_custom_call.1} parent=11 // pred_check_branch
          %419 = sbr.rel (%p417) target = $region56
        $region55: #{tpu_custom_call.1} parent=11 // pred_region
          _
        $region56: #{tpu_custom_call.1} parent=11 // pred_fallthru
          _
      $region12: #{tpu_custom_call.1} parent=5 // pred_fallthru
        _
      %p420 = scmp.lt.s32.totalorder %s27, 2
      // Predicated region
      $region57: #{tpu_custom_call.1} parent=5 // pred_check
        %p421 = pneg %p420
      $region58: #{tpu_custom_call.1} parent=5 // pred_check_branch
        %423 = sbr.rel (%p421) target = $region60
      $region59: #{tpu_custom_call.1} parent=5 // pred_region
        // Predicated region
        $region61: #{tpu_custom_call.1} parent=59 // pred_check
          %p424 = pneg %p47
        $region62: #{tpu_custom_call.1} parent=59 // pred_check_branch
          %426 = sbr.rel (%p424) target = $region64
        $region63: #{tpu_custom_call.1} parent=59 // pred_region
          %s427 = sand.u32 %s37, 1
          %s428 = scalar_lea.sflag [#allocation8], %s427
          %s429 = sand.u32 %s37, 1
          %s430 = smul.addr %s429, 8
          %s431 = scalar_lea.vmem [#allocation7], %s430
          %433 = vsyncadd %s428, 0
          %s434 = smul.addr %s27, 8
          %s435 = scalar_lea.hbm %s0, %s434
          %s437 = sshll.u32 %s435, 4
          %s438 = int_to_ptr.hbm [resolvable:$true] %s437
          %s439 = sshll.u32 %s431, 4
          %s440 = int_to_ptr.vmem [resolvable:$true] %s439
          %442 = dma.hbm_to_vmem [thread:$0]  %s438, 128, %s440, %s428
        $region64: #{tpu_custom_call.1} parent=59 // pred_fallthru
          _
      $region60: #{tpu_custom_call.1} parent=5 // pred_fallthru
        _
      %p443 = scmp.le.s32.totalorder 1, %s27
      %p444 = scmp.lt.s32.totalorder %s27, 3
      %p445 = pnand %p443, %p444
      %p446 = pneg %p445
      // Predicated region
      $region65: #{tpu_custom_call.1} parent=5 // pred_check
        _
      $region66: #{tpu_custom_call.1} parent=5 // pred_check_branch
        %448 = sbr.rel (%p445) target = $region68
      $region67: #{tpu_custom_call.1} parent=5 // pred_region
        %s449 = ssub.s32 %s27, 1
        %s450 = sand.u32 %s40, 1
        %s451 = scalar_lea.sflag [#allocation8], %s450
        %s452 = sand.u32 %s40, 1
        %s453 = smul.addr %s452, 8
        %s454 = scalar_lea.vmem [#allocation7], %s453
        // Predicated region
        $region69: #{tpu_custom_call.1} parent=67 // pred_check
          %p455 = pneg %p53
        $region70: #{tpu_custom_call.1} parent=67 // pred_check_branch
          %457 = sbr.rel (%p455) target = $region72
        $region71: #{tpu_custom_call.1} parent=67 // pred_region
          %459 = dma.done %s451, 128
        $region72: #{tpu_custom_call.1} parent=67 // pred_fallthru
          _
        // Predicated region
        $region73: #{tpu_custom_call.1} parent=67 // pred_check
          %p460 = pneg %p74
        $region74: #{tpu_custom_call.1} parent=67 // pred_check_branch
          %462 = sbr.rel (%p460) target = $region76
        $region75: #{tpu_custom_call.1} parent=67 // pred_region
          %464 = dma.done [#allocation11], 16
        $region76: #{tpu_custom_call.1} parent=67 // pred_fallthru
          _
        // Predicated region
        $region77: #{tpu_custom_call.1} parent=67 // pred_check
          %p465 = pneg %p116
        $region78: #{tpu_custom_call.1} parent=67 // pred_check_branch
          %467 = sbr.rel (%p465) target = $region80
        $region79: #{tpu_custom_call.1} parent=67 // pred_region
          %469 = dma.done [#allocation11], 512
        $region80: #{tpu_custom_call.1} parent=67 // pred_fallthru
          _
        // Predicated region
        $region81: #{tpu_custom_call.1} parent=67 // pred_check
          %p470 = pneg %p158
        $region82: #{tpu_custom_call.1} parent=67 // pred_check_branch
          %472 = sbr.rel (%p470) target = $region84
        $region83: #{tpu_custom_call.1} parent=67 // pred_region
          %474 = dma.done [#allocation14], 512
        $region84: #{tpu_custom_call.1} parent=67 // pred_fallthru
          _
        // Predicated region
        $region85: #{tpu_custom_call.1} parent=67 // pred_check
          %p475 = pneg %p200
        $region86: #{tpu_custom_call.1} parent=67 // pred_check_branch
          %477 = sbr.rel (%p475) target = $region88
        $region87: #{tpu_custom_call.1} parent=67 // pred_region
          %479 = dma.done [#allocation14], 512
        $region88: #{tpu_custom_call.1} parent=67 // pred_fallthru
          _
        // Predicated region
        $region89: #{tpu_custom_call.1} parent=67 // pred_check
          %p480 = pneg %p221
        $region90: #{tpu_custom_call.1} parent=67 // pred_check_branch
          %482 = sbr.rel (%p480) target = $region92
        $region91: #{tpu_custom_call.1} parent=67 // pred_region
          %484 = dma.done [#allocation17], 128
        $region92: #{tpu_custom_call.1} parent=67 // pred_fallthru
          _
        // Predicated region
        $region93: #{tpu_custom_call.1} parent=67 // pred_check
          %p485 = pneg %p263
        $region94: #{tpu_custom_call.1} parent=67 // pred_check_branch
          %487 = sbr.rel (%p485) target = $region96
        $region95: #{tpu_custom_call.1} parent=67 // pred_region
          %489 = dma.done [#allocation17], 256
        $region96: #{tpu_custom_call.1} parent=67 // pred_fallthru
          _
        %s490 = sand.u32 %s40, 1
        %s491 = scalar_lea.sflag [#allocation8], %s490
        %s492 = sand.u32 %s40, 1
        %s493 = smul.addr %s492, 8
        %s494 = scalar_lea.vmem [#allocation7], %s493
        %p495 = pneg %p53
        %p496 = pneg %p50
        %p497 = pneg %p74
        %p498 = pneg %p71
        %p499 = pneg %p95
        %p500 = pneg %p92
        %p501 = pneg %p116
        %p502 = pneg %p113
        %p503 = pneg %p137
        %p504 = pneg %p134
        %p505 = pneg %p158
        %p506 = pneg %p155
        %p507 = pneg %p179
        %p508 = pneg %p176
        %p509 = pneg %p200
        %p510 = pneg %p197
        %p511 = pneg %p221
        %p512 = pneg %p218
        %p513 = pneg %p242
        %p514 = pneg %p239
        %p515 = pneg %p263
        %p516 = pneg %p260
        %p517 = pneg %p284
        %p518 = pneg %p281
        %p519 = pneg %p310
        %p520 = pneg %p307
        %s521 = sand.u32 %s297, 1
        %s522 = scalar_lea.sflag [#allocation9], %s521
        %s523 = sand.u32 %s297, 1
        %s524 = smul.addr %s523, 8
        %s525 = scalar_lea.vmem [#allocation19], %s524
        %v526 = vld [vmem:[%s454] sm:$0xff]
        %vm527 = vcmask 261120
        %v528 = vsel %vm527, %v526, 0.0
        %529 = vadd.xlane.f32.xlu0 %v528
        %v530 = vpop.xlane.xlu0 %529
        %v531 = vrcp.pop 32.0
        %v532 = vmul.f32 32.0, %v531
        %v533 = vsub.f32 1.0, %v532
        %v534 = vmul.f32 %v531, %v533
        %v535 = vadd.f32 %v531, %v534
        %vm536 = vweird.f32 %v531
        %v537 = vsel %vm536, %v531, %v535
        %v538 = vmul.f32 %v530, %v537
        %v539 = vsub.f32 %v526, %v538
        %v540 = vmul.f32 %v539, %v539
        %v541 = vsel %vm527, %v540, 0.0
        %542 = vadd.xlane.f32.xlu0 %v541
        %v543 = vpop.xlane.xlu0 %542
        %v544 = vmul.f32 %v543, %v537
        %v545 = vadd.f32 %v544, 1e-05
        %v546 = vrsqrt.pop %v545
        %v547 = vmul.f32 %v546, %v545
        %v548 = vmul.f32 %v547, %v546
        %v549 = vmul.f32 0.5, %v548
        %v550 = vsub.f32 1.5, %v549
        %v551 = vmul.f32 %v546, %v550
        %vm552 = vweird.f32 %v545
        %vm553 = vweird.f32 %v546
        %vm554 = vmor %vm552, %vm553
        %v555 = vsel %vm554, %v546, %v551
        %v556 = vmul.f32 %v539, %v555
        %v557 = vld [vmem:[#allocation10] sm:$0x1]
        %v559 = vperm.slane %v557, 0
        %v561 = vmul.f32 %v556, %v559
        %v562 = vld [vmem:[%s2] sm:$0x1]
        %v564 = vperm.slane %v562, 0
        %v566 = vadd.f32 %v561, %v564
        %v567 = vld [vmem:[#allocation12] sm:$0xff]
        %v568 = vld [vmem:[#allocation12 + $0x8] sm:$0xff]
        %v569 = vld [vmem:[#allocation12 + $0x10] sm:$0xff]
        %v570 = vld [vmem:[#allocation12 + $0x18] sm:$0xff]
        %v571 = vld [vmem:[%s4] sm:$0x1]
        %v573 = vperm.slane %v571, 0
        %v576 = vsel %vm527, %v566, 0
        %578 = vmatpush.msra.mxu0 0.0
        %579 = vmatpush.msra.mxu0 0.0
        %580 = vmatpush.msra.mxu0 0.0
        %581 = vmatpush.msra.mxu0 0.0
        %582 = vmatpush.msra.mxu0 0.0
        %583 = vmatpush.msra.mxu0 0.0
        %584 = vmatpush.msra.mxu0 0.0
        %585 = vmatpush.msra.mxu0 0.0
        %586 = vmatpush.msra.mxu0 0.0
        %587 = vmatpush.msra.mxu0 0.0
        %588 = vmatpush.msra.mxu0 0.0
        %589 = vmatpush.msra.mxu0 0.0
        %590 = vmatpush.msra.mxu0 %v570
        %591 = vmatpush.msra.mxu0 %v569
        %592 = vmatpush.msra.mxu0 %v568
        %593 = vmatpush.msra.mxu0 %v567
        %594 = vmatmul.f32.gmra.mxu0 %v576
        %v595 = vpop.f32.mrf.mxu0
        %v596 = vadd.f32 %v573, %v595
        %597 = vdwg.mxu0
        %v598 = vxor.u32 %v596, 2147483648
        %v599 = vmul.f32 %v598, 1.442695
        %v600 = vpow.pop %v599
        %v601 = vadd.f32 %v600, 1.0
        %v602 = vrcp.pop %v601
        %v603 = vmul.f32 %v601, %v602
        %v604 = vsub.f32 1.0, %v603
        %v605 = vmul.f32 %v602, %v604
        %v606 = vadd.f32 %v602, %v605
        %vm607 = vweird.f32 %v601
        %vm608 = vweird.f32 %v602
        %vm609 = vmor %vm607, %vm608
        %v610 = vsel %vm609, %v602, %v606
        %v611 = vand.u32 2147483647, %v601
        %vm612 = vcmp.eq.f32.partialorder %v611, 8.507059e+37
        %v613 = vand.u32 %v601, 2147483648
        %v614 = vor.u32 1.1754944e-38, %v613
        %v615 = vsel %vm612, %v614, %v610
        %v616 = vmul.f32 1.0, %v615
        %v617 = vmul.f32 %v596, %v616
        %v618 = vld [vmem:[#allocation13] sm:$0xff]
        %v619 = vld [vmem:[#allocation13 + $0x8] sm:$0xff]
        %v620 = vld [vmem:[#allocation13 + $0x10] sm:$0xff]
        %v621 = vld [vmem:[#allocation13 + $0x18] sm:$0xff]
        %v622 = vld [vmem:[%s6] sm:$0x1]
        %v624 = vperm.slane %v622, 0
        %v627 = vsel %vm527, %v596, 0
        %629 = vmatpush.msra.mxu0 0.0
        %630 = vmatpush.msra.mxu0 0.0
        %631 = vmatpush.msra.mxu0 0.0
        %632 = vmatpush.msra.mxu0 0.0
        %633 = vmatpush.msra.mxu0 0.0
        %634 = vmatpush.msra.mxu0 0.0
        %635 = vmatpush.msra.mxu0 0.0
        %636 = vmatpush.msra.mxu0 0.0
        %637 = vmatpush.msra.mxu0 0.0
        %638 = vmatpush.msra.mxu0 0.0
        %639 = vmatpush.msra.mxu0 0.0
        %640 = vmatpush.msra.mxu0 0.0
        %641 = vmatpush.msra.mxu0 %v621
        %642 = vmatpush.msra.mxu0 %v620
        %643 = vmatpush.msra.mxu0 %v619
        %644 = vmatpush.msra.mxu0 %v618
        %645 = vmatmul.f32.gmra.mxu0 %v627
        %v646 = vpop.f32.mrf.mxu0
        %v647 = vadd.f32 %v624, %v646
        %648 = vdwg.mxu0
        %v649 = vmax.f32 %v647, 0.0
        %vm650 = vcmp.ne.f32.partialorder %v647, %v647
        %v651 = vadd.f32 %v647, 0.0
        %v652 = vand.u32 2147483647, %v647
        %v653 = vsub.f32 0.0, %v652
        %v654 = vmul.f32 %v653, 1.442695
        %v655 = vpow.pop %v654
        %v656 = vadd.f32 %v655, 1.0
        %v657 = vlog2.pop %v656
        %v658 = vmul.f32 %v657, 0.6931472
        %v659 = vmul.f32 -0.5, %v655
        %v660 = vadd.f32 %v659, 1.0
        %v661 = vmul.f32 %v660, %v655
        %v662 = vand.u32 2147483647, %v655
        %vm663 = vcmp.lt.f32.partialorder %v662, 0.0004427343
        %v664 = vsel %vm663, %v661, %v658
        %v665 = vadd.f32 %v649, %v664
        %v666 = vsel %vm650, %v651, %v665
        %668 = vrot.lane.b32.xlu0 %v666, 96
        %v669 = vpop.permute.xlu0 %668
        %v671 = vld [vmem:[#allocation15] sm:$0xff]
        %v672 = vld [vmem:[#allocation15 + $0x8] sm:$0xff]
        %v673 = vld [vmem:[#allocation15 + $0x10] sm:$0xff]
        %v674 = vld [vmem:[#allocation15 + $0x18] sm:$0xff]
        %v675 = vsel %vm527, %v666, 0
        %v677 = vsel %vm527, %v669, 0
        %679 = vmatpush.msra.mxu0 0.0
        %680 = vmatpush.msra.mxu0 0.0
        %681 = vmatpush.msra.mxu0 0.0
        %682 = vmatpush.msra.mxu0 0.0
        %683 = vmatpush.msra.mxu0 0.0
        %684 = vmatpush.msra.mxu0 0.0
        %685 = vmatpush.msra.mxu0 0.0
        %686 = vmatpush.msra.mxu0 0.0
        %687 = vmatpush.msra.mxu0 0.0
        %688 = vmatpush.msra.mxu0 0.0
        %689 = vmatpush.msra.mxu0 0.0
        %690 = vmatpush.msra.mxu0 0.0
        %691 = vmatpush.msra.mxu0 %v674
        %692 = vmatpush.msra.mxu0 %v673
        %693 = vmatpush.msra.mxu0 %v672
        %694 = vmatpush.msra.mxu0 %v671
        %695 = vmatmul.f32.gmra.mxu0 %v675
        %v696 = vpop.f32.mrf.mxu0
        %v697 = vadd.f32 0.0, %v696
        %698 = vmatmul.f32.gmra.mxu0 %v677
        %v699 = vpop.f32.mrf.mxu0
        %v700 = vadd.f32 0.0, %v699
        %701 = vdwg.mxu0
        %v702 = vld [vmem:[#allocation16] sm:$0xff]
        %v703 = vld [vmem:[%s9] sm:$0x1]
        %v705 = vperm.slane %v703, 0
        %vm707 = vcmask 64512
        %v709 = vsel %vm707, %v697, 0
        %v712 = vsel %vm707, %v700, 0
        %714 = vmatpush.msra.mxu0 0.0
        %715 = vmatpush.msra.mxu0 0.0
        %716 = vmatpush.msra.mxu0 0.0
        %717 = vmatpush.msra.mxu0 0.0
        %718 = vmatpush.msra.mxu0 0.0
        %719 = vmatpush.msra.mxu0 0.0
        %720 = vmatpush.msra.mxu0 0.0
        %721 = vmatpush.msra.mxu0 0.0
        %722 = vmatpush.msra.mxu0 0.0
        %723 = vmatpush.msra.mxu0 0.0
        %724 = vmatpush.msra.mxu0 0.0
        %725 = vmatpush.msra.mxu0 0.0
        %726 = vmatpush.msra.mxu0 0.0
        %727 = vmatpush.msra.mxu0 0.0
        %728 = vmatpush.msra.mxu0 0.0
        %729 = vmatpush.msra.mxu0 %v702
        %730 = vmatmul.f32.gmra.mxu0 %v709
        %v731 = vpop.f32.mrf.mxu0
        %v732 = vadd.f32 %v705, %v731
        %733 = vmatmul.f32.gmra.mxu0 %v712
        %v734 = vpop.f32.mrf.mxu0
        %v735 = vadd.f32 %v705, %v734
        %736 = vdwg.mxu0
        %v737 = vmax.f32 %v732, 0.0
        %v738 = vmax.f32 %v735, 0.0
        %vm739 = vcmp.ne.f32.partialorder %v732, %v732
        %vm740 = vcmp.ne.f32.partialorder %v735, %v735
        %v741 = vadd.f32 %v732, 0.0
        %v742 = vadd.f32 %v735, 0.0
        %v743 = vand.u32 2147483647, %v732
        %v744 = vand.u32 2147483647, %v735
        %v745 = vsub.f32 0.0, %v743
        %v746 = vsub.f32 0.0, %v744
        %v747 = vmul.f32 %v745, 1.442695
        %v748 = vpow.pop %v747
        %v749 = vmul.f32 %v746, 1.442695
        %v750 = vpow.pop %v749
        %v751 = vadd.f32 %v748, 1.0
        %v752 = vlog2.pop %v751
        %v753 = vmul.f32 %v752, 0.6931472
        %v754 = vmul.f32 -0.5, %v748
        %v755 = vadd.f32 %v754, 1.0
        %v756 = vmul.f32 %v755, %v748
        %v757 = vand.u32 2147483647, %v748
        %vm758 = vcmp.lt.f32.partialorder %v757, 0.0004427343
        %v759 = vsel %vm758, %v756, %v753
        %v760 = vadd.f32 %v750, 1.0
        %v761 = vlog2.pop %v760
        %v762 = vmul.f32 %v761, 0.6931472
        %v763 = vmul.f32 -0.5, %v750
        %v764 = vadd.f32 %v763, 1.0
        %v765 = vmul.f32 %v764, %v750
        %v766 = vand.u32 2147483647, %v750
        %vm767 = vcmp.lt.f32.partialorder %v766, 0.0004427343
        %v768 = vsel %vm767, %v765, %v762
        %v769 = vadd.f32 %v737, %v759
        %v770 = vadd.f32 %v738, %v768
        %v771 = vsel %vm739, %v741, %v769
        %v772 = vsel %vm740, %v742, %v770
        %v773 = vmul.f32 %v771, %v666
        %v774 = vmul.f32 %v772, %v669
        %v775 = vld [vmem:[#allocation18] sm:$0xff]
        %v776 = vld [vmem:[#allocation18 + $0x8] sm:$0xff]
        %v777 = vmul.f32 %v775, 1.442695
        %v778 = vpow.pop %v777
        %v779 = vmul.f32 %v776, 1.442695
        %v780 = vpow.pop %v779
        %v781 = vsub.f32 0.0, %v778
        %v782 = vsub.f32 0.0, %v780
        %785 = vrot.lane.b32.xlu0 %v781, 32
        %v786 = vpop.permute.xlu0 %785
        %787 = vrot.lane.b32.xlu0 %v782, 32
        %v788 = vpop.permute.xlu0 %787
        %v791 = vsel %vm527, %v781, %v786
        %v792 = vsel %vm527, %v782, %v788
        %794 = vrot.lane.b32.xlu0 %v772, 32
        %v795 = vpop.permute.xlu0 %794
        %v797 = vsel %vm527, %v771, %v795
        %vm798 = vcmask 523264
        %799 = vst.msk [vmem:[#allocation2] sm:$0xff] %vm798, %v797
        %801 = vrot.lane.b32.xlu0 %v774, 32
        %v802 = vpop.permute.xlu0 %801
        %v804 = vsel %vm527, %v773, %v802
        %805 = vst.msk [vmem:[#allocation3] sm:$0xff] %vm798, %v804
        %806 = vrot.lane.b32.xlu0 %v697, 120
        %v807 = vpop.permute.xlu0 %806
        %809 = vrot.lane.b32.xlu0 %v700, 8
        %v810 = vpop.permute.xlu0 %809
        %vm812 = vcmask 130048
        %v813 = vsel %vm812, %v807, %v810
        %814 = vst.msk [vmem:[#allocation4] sm:$0xff] %vm527, %v813
        %815 = vrot.lane.b32.xlu0 %v697, 104
        %v816 = vpop.permute.xlu0 %815
        %818 = vrot.lane.b32.xlu0 %v700, 120
        %v819 = vpop.permute.xlu0 %818
        %v821 = vsel %vm812, %v816, %v819
        %822 = vst.msk [vmem:[#allocation5] sm:$0xff] %vm527, %v821
        %v823 = vld [vmem:[#allocation2] sm:$0xff]
        %v824 = vld [vmem:[#allocation3] sm:$0xff]
        %v825 = vld [vmem:[#allocation4] sm:$0xff]
        %v826 = vld [vmem:[#allocation5] sm:$0xff]
        %v828 = vrot.slane %v823, 1
        %v829 = vrot.slane %v823, 2
        %v830 = vrot.slane %v823, 3
        %v831 = vrot.slane %v823, 4
        %v832 = vrot.slane %v823, 5
        %v833 = vrot.slane %v823, 6
        %v834 = vrot.slane %v823, 7
        %v835 = vperm.slane %v823, 0
        %v836 = vperm.slane %v828, 0
        %v837 = vperm.slane %v829, 0
        %v838 = vperm.slane %v830, 0
        %v839 = vperm.slane %v831, 0
        %v840 = vperm.slane %v832, 0
        %v841 = vperm.slane %v833, 0
        %v842 = vperm.slane %v834, 0
        %v851 = vmul.f32 %v835, %v791
        %v852 = vmul.f32 %v835, %v792
        %v853 = vmul.f32 %v836, %v791
        %v854 = vmul.f32 %v836, %v792
        %v855 = vmul.f32 %v837, %v791
        %v856 = vmul.f32 %v837, %v792
        %v857 = vmul.f32 %v838, %v791
        %v858 = vmul.f32 %v838, %v792
        %v859 = vmul.f32 %v839, %v791
        %v860 = vmul.f32 %v839, %v792
        %v861 = vmul.f32 %v840, %v791
        %v862 = vmul.f32 %v840, %v792
        %v863 = vmul.f32 %v841, %v791
        %v864 = vmul.f32 %v841, %v792
        %v865 = vmul.f32 %v842, %v791
        %v866 = vmul.f32 %v842, %v792
        %v867 = vmul.f32 %v851, 1.442695
        %v868 = vpow.pop %v867
        %v869 = vmul.f32 %v852, 1.442695
        %v870 = vpow.pop %v869
        %v871 = vmul.f32 %v853, 1.442695
        %v872 = vpow.pop %v871
        %v873 = vmul.f32 %v854, 1.442695
        %v874 = vpow.pop %v873
        %v875 = vmul.f32 %v855, 1.442695
        %v876 = vpow.pop %v875
        %v877 = vmul.f32 %v856, 1.442695
        %v878 = vpow.pop %v877
        %v879 = vmul.f32 %v857, 1.442695
        %v880 = vpow.pop %v879
        %v881 = vmul.f32 %v858, 1.442695
        %v882 = vpow.pop %v881
        %v883 = vmul.f32 %v859, 1.442695
        %v884 = vpow.pop %v883
        %v885 = vmul.f32 %v860, 1.442695
        %v886 = vpow.pop %v885
        %v887 = vmul.f32 %v861, 1.442695
        %v888 = vpow.pop %v887
        %v889 = vmul.f32 %v862, 1.442695
        %v890 = vpow.pop %v889
        %v891 = vmul.f32 %v863, 1.442695
        %v892 = vpow.pop %v891
        %v893 = vmul.f32 %v864, 1.442695
        %v894 = vpow.pop %v893
        %v895 = vmul.f32 %v865, 1.442695
        %v896 = vpow.pop %v895
        %v897 = vmul.f32 %v866, 1.442695
        %v898 = vpow.pop %v897
        %v900 = vrot.slane %v824, 1
        %v901 = vrot.slane %v824, 2
        %v902 = vrot.slane %v824, 3
        %v903 = vrot.slane %v824, 4
        %v904 = vrot.slane %v824, 5
        %v905 = vrot.slane %v824, 6
        %v906 = vrot.slane %v824, 7
        %v907 = vperm.slane %v825, 0
        %v908 = vlaneseq
        %v909 = vshrl.u32 %v908, 7
        %911 = vset.pattern.permute.xlu0 %v909
        %912 = vperm.xlu0 %911, %v907
        %v913 = vpop.permute.xlu0 %912
        %v914 = vlaneseq
        %v915 = vshrl.u32 %v914, 7
        %v916 = vadd.s32 %v915, 8
        %917 = vset.pattern.permute.xlu0 %v916
        %918 = vperm.xlu0 %917, %v907
        %v919 = vpop.permute.xlu0 %918
        %v920 = vperm.slane %v825, 1
        %v921 = vlaneseq
        %v922 = vshrl.u32 %v921, 7
        %924 = vset.pattern.permute.xlu0 %v922
        %925 = vperm.xlu0 %924, %v920
        %v926 = vpop.permute.xlu0 %925
        %v927 = vlaneseq
        %v928 = vshrl.u32 %v927, 7
        %v929 = vadd.s32 %v928, 8
        %930 = vset.pattern.permute.xlu0 %v929
        %931 = vperm.xlu0 %930, %v920
        %v932 = vpop.permute.xlu0 %931
        %v933 = vperm.slane %v825, 2
        %v934 = vlaneseq
        %v935 = vshrl.u32 %v934, 7
        %937 = vset.pattern.permute.xlu0 %v935
        %938 = vperm.xlu0 %937, %v933
        %v939 = vpop.permute.xlu0 %938
        %v940 = vlaneseq
        %v941 = vshrl.u32 %v940, 7
        %v942 = vadd.s32 %v941, 8
        %943 = vset.pattern.permute.xlu0 %v942
        %944 = vperm.xlu0 %943, %v933
        %v945 = vpop.permute.xlu0 %944
        %v946 = vperm.slane %v825, 3
        %v947 = vlaneseq
        %v948 = vshrl.u32 %v947, 7
        %950 = vset.pattern.permute.xlu0 %v948
        %951 = vperm.xlu0 %950, %v946
        %v952 = vpop.permute.xlu0 %951
        %v953 = vlaneseq
        %v954 = vshrl.u32 %v953, 7
        %v955 = vadd.s32 %v954, 8
        %956 = vset.pattern.permute.xlu0 %v955
        %957 = vperm.xlu0 %956, %v946
        %v958 = vpop.permute.xlu0 %957
        %v959 = vperm.slane %v825, 4
        %v960 = vlaneseq
        %v961 = vshrl.u32 %v960, 7
        %963 = vset.pattern.permute.xlu0 %v961
        %964 = vperm.xlu0 %963, %v959
        %v965 = vpop.permute.xlu0 %964
        %v966 = vlaneseq
        %v967 = vshrl.u32 %v966, 7
        %v968 = vadd.s32 %v967, 8
        %969 = vset.pattern.permute.xlu0 %v968
        %970 = vperm.xlu0 %969, %v959
        %v971 = vpop.permute.xlu0 %970
        %v972 = vperm.slane %v825, 5
        %v973 = vlaneseq
        %v974 = vshrl.u32 %v973, 7
        %976 = vset.pattern.permute.xlu0 %v974
        %977 = vperm.xlu0 %976, %v972
        %v978 = vpop.permute.xlu0 %977
        %v979 = vlaneseq
        %v980 = vshrl.u32 %v979, 7
        %v981 = vadd.s32 %v980, 8
        %982 = vset.pattern.permute.xlu0 %v981
        %983 = vperm.xlu0 %982, %v972
        %v984 = vpop.permute.xlu0 %983
        %v985 = vperm.slane %v825, 6
        %v986 = vlaneseq
        %v987 = vshrl.u32 %v986, 7
        %989 = vset.pattern.permute.xlu0 %v987
        %990 = vperm.xlu0 %989, %v985
        %v991 = vpop.permute.xlu0 %990
        %v992 = vlaneseq
        %v993 = vshrl.u32 %v992, 7
        %v994 = vadd.s32 %v993, 8
        %995 = vset.pattern.permute.xlu0 %v994
        %996 = vperm.xlu0 %995, %v985
        %v997 = vpop.permute.xlu0 %996
        %v998 = vperm.slane %v825, 7
        %v999 = vlaneseq
        %v1000 = vshrl.u32 %v999, 7
        %1002 = vset.pattern.permute.xlu0 %v1000
        %1003 = vperm.xlu0 %1002, %v998
        %v1004 = vpop.permute.xlu0 %1003
        %v1005 = vlaneseq
        %v1006 = vshrl.u32 %v1005, 7
        %v1007 = vadd.s32 %v1006, 8
        %1008 = vset.pattern.permute.xlu0 %v1007
        %1009 = vperm.xlu0 %1008, %v998
        %v1010 = vpop.permute.xlu0 %1009
        %v1011 = vperm.slane %v824, 0
        %v1012 = vperm.slane %v900, 0
        %v1013 = vperm.slane %v901, 0
        %v1014 = vperm.slane %v902, 0
        %v1015 = vperm.slane %v903, 0
        %v1016 = vperm.slane %v904, 0
        %v1017 = vperm.slane %v905, 0
        %v1018 = vperm.slane %v906, 0
        %v1027 = vmul.f32 %v1011, %v913
        %v1028 = vmul.f32 %v1011, %v919
        %v1029 = vmul.f32 %v1012, %v926
        %v1030 = vmul.f32 %v1012, %v932
        %v1031 = vmul.f32 %v1013, %v939
        %v1032 = vmul.f32 %v1013, %v945
        %v1033 = vmul.f32 %v1014, %v952
        %v1034 = vmul.f32 %v1014, %v958
        %v1035 = vmul.f32 %v1015, %v965
        %v1036 = vmul.f32 %v1015, %v971
        %v1037 = vmul.f32 %v1016, %v978
        %v1038 = vmul.f32 %v1016, %v984
        %v1039 = vmul.f32 %v1017, %v991
        %v1040 = vmul.f32 %v1017, %v997
        %v1041 = vmul.f32 %v1018, %v1004
        %v1042 = vmul.f32 %v1018, %v1010
        %v1043 = vlaneseq
        %v1044 = vshrl.u32 %v1043, 7
        %v1045 = vadd.s32 %v1044, 16
        %1046 = vset.pattern.permute.xlu0 %v1045
        %1047 = vperm.xlu0 %1046, %v907
        %v1048 = vpop.permute.xlu0 %1047
        %v1049 = vlaneseq
        %v1050 = vshrl.u32 %v1049, 7
        %v1051 = vadd.s32 %v1050, 24
        %1052 = vset.pattern.permute.xlu0 %v1051
        %1053 = vperm.xlu0 %1052, %v907
        %v1054 = vpop.permute.xlu0 %1053
        %v1055 = vlaneseq
        %v1056 = vshrl.u32 %v1055, 7
        %v1057 = vadd.s32 %v1056, 16
        %1058 = vset.pattern.permute.xlu0 %v1057
        %1059 = vperm.xlu0 %1058, %v920
        %v1060 = vpop.permute.xlu0 %1059
        %v1061 = vlaneseq
        %v1062 = vshrl.u32 %v1061, 7
        %v1063 = vadd.s32 %v1062, 24
        %1064 = vset.pattern.permute.xlu0 %v1063
        %1065 = vperm.xlu0 %1064, %v920
        %v1066 = vpop.permute.xlu0 %1065
        %v1067 = vlaneseq
        %v1068 = vshrl.u32 %v1067, 7
        %v1069 = vadd.s32 %v1068, 16
        %1070 = vset.pattern.permute.xlu0 %v1069
        %1071 = vperm.xlu0 %1070, %v933
        %v1072 = vpop.permute.xlu0 %1071
        %v1073 = vlaneseq
        %v1074 = vshrl.u32 %v1073, 7
        %v1075 = vadd.s32 %v1074, 24
        %1076 = vset.pattern.permute.xlu0 %v1075
        %1077 = vperm.xlu0 %1076, %v933
        %v1078 = vpop.permute.xlu0 %1077
        %v1079 = vlaneseq
        %v1080 = vshrl.u32 %v1079, 7
        %v1081 = vadd.s32 %v1080, 16
        %1082 = vset.pattern.permute.xlu0 %v1081
        %1083 = vperm.xlu0 %1082, %v946
        %v1084 = vpop.permute.xlu0 %1083
        %v1085 = vlaneseq
        %v1086 = vshrl.u32 %v1085, 7
        %v1087 = vadd.s32 %v1086, 24
        %1088 = vset.pattern.permute.xlu0 %v1087
        %1089 = vperm.xlu0 %1088, %v946
        %v1090 = vpop.permute.xlu0 %1089
        %v1091 = vlaneseq
        %v1092 = vshrl.u32 %v1091, 7
        %v1093 = vadd.s32 %v1092, 16
        %1094 = vset.pattern.permute.xlu0 %v1093
        %1095 = vperm.xlu0 %1094, %v959
        %v1096 = vpop.permute.xlu0 %1095
        %v1097 = vlaneseq
        %v1098 = vshrl.u32 %v1097, 7
        %v1099 = vadd.s32 %v1098, 24
        %1100 = vset.pattern.permute.xlu0 %v1099
        %1101 = vperm.xlu0 %1100, %v959
        %v1102 = vpop.permute.xlu0 %1101
        %v1103 = vlaneseq
        %v1104 = vshrl.u32 %v1103, 7
        %v1105 = vadd.s32 %v1104, 16
        %1106 = vset.pattern.permute.xlu0 %v1105
        %1107 = vperm.xlu0 %1106, %v972
        %v1108 = vpop.permute.xlu0 %1107
        %v1109 = vlaneseq
        %v1110 = vshrl.u32 %v1109, 7
        %v1111 = vadd.s32 %v1110, 24
        %1112 = vset.pattern.permute.xlu0 %v1111
        %1113 = vperm.xlu0 %1112, %v972
        %v1114 = vpop.permute.xlu0 %1113
        %v1115 = vlaneseq
        %v1116 = vshrl.u32 %v1115, 7
        %v1117 = vadd.s32 %v1116, 16
        %1118 = vset.pattern.permute.xlu0 %v1117
        %1119 = vperm.xlu0 %1118, %v985
        %v1120 = vpop.permute.xlu0 %1119
        %v1121 = vlaneseq
        %v1122 = vshrl.u32 %v1121, 7
        %v1123 = vadd.s32 %v1122, 24
        %1124 = vset.pattern.permute.xlu0 %v1123
        %1125 = vperm.xlu0 %1124, %v985
        %v1126 = vpop.permute.xlu0 %1125
        %v1127 = vlaneseq
        %v1128 = vshrl.u32 %v1127, 7
        %v1129 = vadd.s32 %v1128, 16
        %1130 = vset.pattern.permute.xlu0 %v1129
        %1131 = vperm.xlu0 %1130, %v998
        %v1132 = vpop.permute.xlu0 %1131
        %v1133 = vlaneseq
        %v1134 = vshrl.u32 %v1133, 7
        %v1135 = vadd.s32 %v1134, 24
        %1136 = vset.pattern.permute.xlu0 %v1135
        %1137 = vperm.xlu0 %1136, %v998
        %v1138 = vpop.permute.xlu0 %1137
        %v1139 = vmul.f32 %v1011, %v1048
        %v1140 = vmul.f32 %v1011, %v1054
        %v1141 = vmul.f32 %v1012, %v1060
        %v1142 = vmul.f32 %v1012, %v1066
        %v1143 = vmul.f32 %v1013, %v1072
        %v1144 = vmul.f32 %v1013, %v1078
        %v1145 = vmul.f32 %v1014, %v1084
        %v1146 = vmul.f32 %v1014, %v1090
        %v1147 = vmul.f32 %v1015, %v1096
        %v1148 = vmul.f32 %v1015, %v1102
        %v1149 = vmul.f32 %v1016, %v1108
        %v1150 = vmul.f32 %v1016, %v1114
        %v1151 = vmul.f32 %v1017, %v1120
        %v1152 = vmul.f32 %v1017, %v1126
        %v1153 = vmul.f32 %v1018, %v1132
        %v1154 = vmul.f32 %v1018, %v1138
        %v1155 = vsel %vm527, %v1027, %v1139
        %v1156 = vsel %vm527, %v1028, %v1140
        %v1157 = vsel %vm527, %v1029, %v1141
        %v1158 = vsel %vm527, %v1030, %v1142
        %v1159 = vsel %vm527, %v1031, %v1143
        %v1160 = vsel %vm527, %v1032, %v1144
        %v1161 = vsel %vm527, %v1033, %v1145
        %v1162 = vsel %vm527, %v1034, %v1146
        %v1163 = vsel %vm527, %v1035, %v1147
        %v1164 = vsel %vm527, %v1036, %v1148
        %v1165 = vsel %vm527, %v1037, %v1149
        %v1166 = vsel %vm527, %v1038, %v1150
        %v1167 = vsel %vm527, %v1039, %v1151
        %v1168 = vsel %vm527, %v1040, %v1152
        %v1169 = vsel %vm527, %v1041, %v1153
        %v1170 = vsel %vm527, %v1042, %v1154
        %v1171 = vperm.slane %v826, 0
        %v1172 = vlaneseq
        %v1173 = vshrl.u32 %v1172, 7
        %1175 = vset.pattern.permute.xlu0 %v1173
        %1176 = vperm.xlu0 %1175, %v1171
        %v1177 = vpop.permute.xlu0 %1176
        %v1178 = vlaneseq
        %v1179 = vshrl.u32 %v1178, 7
        %v1180 = vadd.s32 %v1179, 8
        %1181 = vset.pattern.permute.xlu0 %v1180
        %1182 = vperm.xlu0 %1181, %v1171
        %v1183 = vpop.permute.xlu0 %1182
        %v1184 = vperm.slane %v826, 1
        %v1185 = vlaneseq
        %v1186 = vshrl.u32 %v1185, 7
        %1188 = vset.pattern.permute.xlu0 %v1186
        %1189 = vperm.xlu0 %1188, %v1184
        %v1190 = vpop.permute.xlu0 %1189
        %v1191 = vlaneseq
        %v1192 = vshrl.u32 %v1191, 7
        %v1193 = vadd.s32 %v1192, 8
        %1194 = vset.pattern.permute.xlu0 %v1193
        %1195 = vperm.xlu0 %1194, %v1184
        %v1196 = vpop.permute.xlu0 %1195
        %v1197 = vperm.slane %v826, 2
        %v1198 = vlaneseq
        %v1199 = vshrl.u32 %v1198, 7
        %1201 = vset.pattern.permute.xlu0 %v1199
        %1202 = vperm.xlu0 %1201, %v1197
        %v1203 = vpop.permute.xlu0 %1202
        %v1204 = vlaneseq
        %v1205 = vshrl.u32 %v1204, 7
        %v1206 = vadd.s32 %v1205, 8
        %1207 = vset.pattern.permute.xlu0 %v1206
        %1208 = vperm.xlu0 %1207, %v1197
        %v1209 = vpop.permute.xlu0 %1208
        %v1210 = vperm.slane %v826, 3
        %v1211 = vlaneseq
        %v1212 = vshrl.u32 %v1211, 7
        %1214 = vset.pattern.permute.xlu0 %v1212
        %1215 = vperm.xlu0 %1214, %v1210
        %v1216 = vpop.permute.xlu0 %1215
        %v1217 = vlaneseq
        %v1218 = vshrl.u32 %v1217, 7
        %v1219 = vadd.s32 %v1218, 8
        %1220 = vset.pattern.permute.xlu0 %v1219
        %1221 = vperm.xlu0 %1220, %v1210
        %v1222 = vpop.permute.xlu0 %1221
        %v1223 = vperm.slane %v826, 4
        %v1224 = vlaneseq
        %v1225 = vshrl.u32 %v1224, 7
        %1227 = vset.pattern.permute.xlu0 %v1225
        %1228 = vperm.xlu0 %1227, %v1223
        %v1229 = vpop.permute.xlu0 %1228
        %v1230 = vlaneseq
        %v1231 = vshrl.u32 %v1230, 7
        %v1232 = vadd.s32 %v1231, 8
        %1233 = vset.pattern.permute.xlu0 %v1232
        %1234 = vperm.xlu0 %1233, %v1223
        %v1235 = vpop.permute.xlu0 %1234
        %v1236 = vperm.slane %v826, 5
        %v1237 = vlaneseq
        %v1238 = vshrl.u32 %v1237, 7
        %1240 = vset.pattern.permute.xlu0 %v1238
        %1241 = vperm.xlu0 %1240, %v1236
        %v1242 = vpop.permute.xlu0 %1241
        %v1243 = vlaneseq
        %v1244 = vshrl.u32 %v1243, 7
        %v1245 = vadd.s32 %v1244, 8
        %1246 = vset.pattern.permute.xlu0 %v1245
        %1247 = vperm.xlu0 %1246, %v1236
        %v1248 = vpop.permute.xlu0 %1247
        %v1249 = vperm.slane %v826, 6
        %v1250 = vlaneseq
        %v1251 = vshrl.u32 %v1250, 7
        %1253 = vset.pattern.permute.xlu0 %v1251
        %1254 = vperm.xlu0 %1253, %v1249
        %v1255 = vpop.permute.xlu0 %1254
        %v1256 = vlaneseq
        %v1257 = vshrl.u32 %v1256, 7
        %v1258 = vadd.s32 %v1257, 8
        %1259 = vset.pattern.permute.xlu0 %v1258
        %1260 = vperm.xlu0 %1259, %v1249
        %v1261 = vpop.permute.xlu0 %1260
        %v1262 = vperm.slane %v826, 7
        %v1263 = vlaneseq
        %v1264 = vshrl.u32 %v1263, 7
        %1266 = vset.pattern.permute.xlu0 %v1264
        %1267 = vperm.xlu0 %1266, %v1262
        %v1268 = vpop.permute.xlu0 %1267
        %v1269 = vlaneseq
        %v1270 = vshrl.u32 %v1269, 7
        %v1271 = vadd.s32 %v1270, 8
        %1272 = vset.pattern.permute.xlu0 %v1271
        %1273 = vperm.xlu0 %1272, %v1262
        %v1274 = vpop.permute.xlu0 %1273
        %v1275 = vlaneseq
        %v1276 = vshrl.u32 %v1275, 7
        %v1277 = vadd.s32 %v1276, 16
        %1278 = vset.pattern.permute.xlu0 %v1277
        %1279 = vperm.xlu0 %1278, %v1171
        %v1280 = vpop.permute.xlu0 %1279
        %v1281 = vlaneseq
        %v1282 = vshrl.u32 %v1281, 7
        %v1283 = vadd.s32 %v1282, 24
        %1284 = vset.pattern.permute.xlu0 %v1283
        %1285 = vperm.xlu0 %1284, %v1171
        %v1286 = vpop.permute.xlu0 %1285
        %v1287 = vlaneseq
        %v1288 = vshrl.u32 %v1287, 7
        %v1289 = vadd.s32 %v1288, 16
        %1290 = vset.pattern.permute.xlu0 %v1289
        %1291 = vperm.xlu0 %1290, %v1184
        %v1292 = vpop.permute.xlu0 %1291
        %v1293 = vlaneseq
        %v1294 = vshrl.u32 %v1293, 7
        %v1295 = vadd.s32 %v1294, 24
        %1296 = vset.pattern.permute.xlu0 %v1295
        %1297 = vperm.xlu0 %1296, %v1184
        %v1298 = vpop.permute.xlu0 %1297
        %v1299 = vlaneseq
        %v1300 = vshrl.u32 %v1299, 7
        %v1301 = vadd.s32 %v1300, 16
        %1302 = vset.pattern.permute.xlu0 %v1301
        %1303 = vperm.xlu0 %1302, %v1197
        %v1304 = vpop.permute.xlu0 %1303
        %v1305 = vlaneseq
        %v1306 = vshrl.u32 %v1305, 7
        %v1307 = vadd.s32 %v1306, 24
        %1308 = vset.pattern.permute.xlu0 %v1307
        %1309 = vperm.xlu0 %1308, %v1197
        %v1310 = vpop.permute.xlu0 %1309
        %v1311 = vlaneseq
        %v1312 = vshrl.u32 %v1311, 7
        %v1313 = vadd.s32 %v1312, 16
        %1314 = vset.pattern.permute.xlu0 %v1313
        %1315 = vperm.xlu0 %1314, %v1210
        %v1316 = vpop.permute.xlu0 %1315
        %v1317 = vlaneseq
        %v1318 = vshrl.u32 %v1317, 7
        %v1319 = vadd.s32 %v1318, 24
        %1320 = vset.pattern.permute.xlu0 %v1319
        %1321 = vperm.xlu0 %1320, %v1210
        %v1322 = vpop.permute.xlu0 %1321
        %v1323 = vlaneseq
        %v1324 = vshrl.u32 %v1323, 7
        %v1325 = vadd.s32 %v1324, 16
        %1326 = vset.pattern.permute.xlu0 %v1325
        %1327 = vperm.xlu0 %1326, %v1223
        %v1328 = vpop.permute.xlu0 %1327
        %v1329 = vlaneseq
        %v1330 = vshrl.u32 %v1329, 7
        %v1331 = vadd.s32 %v1330, 24
        %1332 = vset.pattern.permute.xlu0 %v1331
        %1333 = vperm.xlu0 %1332, %v1223
        %v1334 = vpop.permute.xlu0 %1333
        %v1335 = vlaneseq
        %v1336 = vshrl.u32 %v1335, 7
        %v1337 = vadd.s32 %v1336, 16
        %1338 = vset.pattern.permute.xlu0 %v1337
        %1339 = vperm.xlu0 %1338, %v1236
        %v1340 = vpop.permute.xlu0 %1339
        %v1341 = vlaneseq
        %v1342 = vshrl.u32 %v1341, 7
        %v1343 = vadd.s32 %v1342, 24
        %1344 = vset.pattern.permute.xlu0 %v1343
        %1345 = vperm.xlu0 %1344, %v1236
        %v1346 = vpop.permute.xlu0 %1345
        %v1347 = vlaneseq
        %v1348 = vshrl.u32 %v1347, 7
        %v1349 = vadd.s32 %v1348, 16
        %1350 = vset.pattern.permute.xlu0 %v1349
        %1351 = vperm.xlu0 %1350, %v1249
        %v1352 = vpop.permute.xlu0 %1351
        %v1353 = vlaneseq
        %v1354 = vshrl.u32 %v1353, 7
        %v1355 = vadd.s32 %v1354, 24
        %1356 = vset.pattern.permute.xlu0 %v1355
        %1357 = vperm.xlu0 %1356, %v1249
        %v1358 = vpop.permute.xlu0 %1357
        %v1359 = vlaneseq
        %v1360 = vshrl.u32 %v1359, 7
        %v1361 = vadd.s32 %v1360, 16
        %1362 = vset.pattern.permute.xlu0 %v1361
        %1363 = vperm.xlu0 %1362, %v1262
        %v1364 = vpop.permute.xlu0 %1363
        %v1365 = vlaneseq
        %v1366 = vshrl.u32 %v1365, 7
        %v1367 = vadd.s32 %v1366, 24
        %1368 = vset.pattern.permute.xlu0 %v1367
        %1369 = vperm.xlu0 %1368, %v1262
        %v1370 = vpop.permute.xlu0 %1369
        %v1371 = vsel %vm527, %v1177, %v1280
        %v1372 = vsel %vm527, %v1183, %v1286
        %v1373 = vsel %vm527, %v1190, %v1292
        %v1374 = vsel %vm527, %v1196, %v1298
        %v1375 = vsel %vm527, %v1203, %v1304
        %v1376 = vsel %vm527, %v1209, %v1310
        %v1377 = vsel %vm527, %v1216, %v1316
        %v1378 = vsel %vm527, %v1222, %v1322
        %v1379 = vsel %vm527, %v1229, %v1328
        %v1380 = vsel %vm527, %v1235, %v1334
        %v1381 = vsel %vm527, %v1242, %v1340
        %v1382 = vsel %vm527, %v1248, %v1346
        %v1383 = vsel %vm527, %v1255, %v1352
        %v1384 = vsel %vm527, %v1261, %v1358
        %v1385 = vsel %vm527, %v1268, %v1364
        %v1386 = vsel %vm527, %v1274, %v1370
        %v1387 = vmul.f32 %v868, 0.0
        %v1388 = vmul.f32 %v870, 0.0
        %v1389 = vadd.f32 %v1387, %v1155
        %v1390 = vadd.f32 %v1388, %v1156
        %v1391 = vmul.f32 %v1389, %v1371
        %v1392 = vmul.f32 %v1390, %v1372
        %v1393 = vsel %vm798, %v1391, 0.0
        %v1394 = vsel %vm798, %v1392, 0.0
        %v1395 = vadd.f32 %v1393, %v1394
        %v1396 = vrot.slane %v1395, 4
        %v1397 = vadd.f32 %v1395, %v1396
        %v1398 = vrot.slane %v1397, 2
        %v1399 = vadd.f32 %v1397, %v1398
        %v1400 = vrot.slane %v1399, 1
        %v1401 = vadd.f32 %v1399, %v1400
        %v1402 = vmul.f32 %v872, %v1389
        %v1403 = vmul.f32 %v874, %v1390
        %v1404 = vadd.f32 %v1402, %v1157
        %v1405 = vadd.f32 %v1403, %v1158
        %v1406 = vmul.f32 %v1404, %v1373
        %v1407 = vmul.f32 %v1405, %v1374
        %v1408 = vsel %vm798, %v1406, 0.0
        %v1409 = vsel %vm798, %v1407, 0.0
        %v1410 = vadd.f32 %v1408, %v1409
        %v1411 = vrot.slane %v1410, 4
        %v1412 = vadd.f32 %v1410, %v1411
        %v1413 = vrot.slane %v1412, 2
        %v1414 = vadd.f32 %v1412, %v1413
        %v1415 = vrot.slane %v1414, 1
        %v1416 = vadd.f32 %v1414, %v1415
        %v1417 = vmul.f32 %v876, %v1404
        %v1418 = vmul.f32 %v878, %v1405
        %v1419 = vadd.f32 %v1417, %v1159
        %v1420 = vadd.f32 %v1418, %v1160
        %v1421 = vmul.f32 %v1419, %v1375
        %v1422 = vmul.f32 %v1420, %v1376
        %v1423 = vsel %vm798, %v1421, 0.0
        %v1424 = vsel %vm798, %v1422, 0.0
        %v1425 = vadd.f32 %v1423, %v1424
        %v1426 = vrot.slane %v1425, 4
        %v1427 = vadd.f32 %v1425, %v1426
        %v1428 = vrot.slane %v1427, 2
        %v1429 = vadd.f32 %v1427, %v1428
        %v1430 = vrot.slane %v1429, 1
        %v1431 = vadd.f32 %v1429, %v1430
        %v1432 = vmul.f32 %v880, %v1419
        %v1433 = vmul.f32 %v882, %v1420
        %v1434 = vadd.f32 %v1432, %v1161
        %v1435 = vadd.f32 %v1433, %v1162
        %v1436 = vmul.f32 %v1434, %v1377
        %v1437 = vmul.f32 %v1435, %v1378
        %v1438 = vsel %vm798, %v1436, 0.0
        %v1439 = vsel %vm798, %v1437, 0.0
        %v1440 = vadd.f32 %v1438, %v1439
        %v1441 = vrot.slane %v1440, 4
        %v1442 = vadd.f32 %v1440, %v1441
        %v1443 = vrot.slane %v1442, 2
        %v1444 = vadd.f32 %v1442, %v1443
        %v1445 = vrot.slane %v1444, 1
        %v1446 = vadd.f32 %v1444, %v1445
        %v1447 = vmul.f32 %v884, %v1434
        %v1448 = vmul.f32 %v886, %v1435
        %v1449 = vadd.f32 %v1447, %v1163
        %v1450 = vadd.f32 %v1448, %v1164
        %v1451 = vmul.f32 %v1449, %v1379
        %v1452 = vmul.f32 %v1450, %v1380
        %v1453 = vsel %vm798, %v1451, 0.0
        %v1454 = vsel %vm798, %v1452, 0.0
        %v1455 = vadd.f32 %v1453, %v1454
        %v1456 = vrot.slane %v1455, 4
        %v1457 = vadd.f32 %v1455, %v1456
        %v1458 = vrot.slane %v1457, 2
        %v1459 = vadd.f32 %v1457, %v1458
        %v1460 = vrot.slane %v1459, 1
        %v1461 = vadd.f32 %v1459, %v1460
        %v1462 = vmul.f32 %v888, %v1449
        %v1463 = vmul.f32 %v890, %v1450
        %v1464 = vadd.f32 %v1462, %v1165
        %v1465 = vadd.f32 %v1463, %v1166
        %v1466 = vmul.f32 %v1464, %v1381
        %v1467 = vmul.f32 %v1465, %v1382
        %v1468 = vsel %vm798, %v1466, 0.0
        %v1469 = vsel %vm798, %v1467, 0.0
        %v1470 = vadd.f32 %v1468, %v1469
        %v1471 = vrot.slane %v1470, 4
        %v1472 = vadd.f32 %v1470, %v1471
        %v1473 = vrot.slane %v1472, 2
        %v1474 = vadd.f32 %v1472, %v1473
        %v1475 = vrot.slane %v1474, 1
        %v1476 = vadd.f32 %v1474, %v1475
        %v1477 = vmul.f32 %v892, %v1464
        %v1478 = vmul.f32 %v894, %v1465
        %v1479 = vadd.f32 %v1477, %v1167
        %v1480 = vadd.f32 %v1478, %v1168
        %v1481 = vmul.f32 %v1479, %v1383
        %v1482 = vmul.f32 %v1480, %v1384
        %v1483 = vsel %vm798, %v1481, 0.0
        %v1484 = vsel %vm798, %v1482, 0.0
        %v1485 = vadd.f32 %v1483, %v1484
        %v1486 = vrot.slane %v1485, 4
        %v1487 = vadd.f32 %v1485, %v1486
        %v1488 = vrot.slane %v1487, 2
        %v1489 = vadd.f32 %v1487, %v1488
        %v1490 = vrot.slane %v1489, 1
        %v1491 = vadd.f32 %v1489, %v1490
        %v1492 = vmul.f32 %v896, %v1479
        %v1493 = vmul.f32 %v898, %v1480
        %v1494 = vadd.f32 %v1492, %v1169
        %v1495 = vadd.f32 %v1493, %v1170
        %v1496 = vmul.f32 %v1494, %v1385
        %v1497 = vmul.f32 %v1495, %v1386
        %v1498 = vsel %vm798, %v1496, 0.0
        %v1499 = vsel %vm798, %v1497, 0.0
        %v1500 = vadd.f32 %v1498, %v1499
        %v1501 = vrot.slane %v1500, 4
        %v1502 = vadd.f32 %v1500, %v1501
        %v1503 = vrot.slane %v1502, 2
        %v1504 = vadd.f32 %v1502, %v1503
        %v1505 = vrot.slane %v1504, 1
        %v1506 = vadd.f32 %v1504, %v1505
        %vm1507 = vcmask 1040384
        %v1508 = vsel %vm1507, %v1401, %v1416
        %vm1509 = vcmask 1041408
        %v1510 = vsel %vm1509, %v1508, %v1431
        %vm1511 = vcmask 1042432
        %v1512 = vsel %vm1511, %v1510, %v1446
        %vm1513 = vcmask 1043456
        %v1514 = vsel %vm1513, %v1512, %v1461
        %vm1515 = vcmask 1044480
        %v1516 = vsel %vm1515, %v1514, %v1476
        %vm1517 = vcmask 1045504
        %v1518 = vsel %vm1517, %v1516, %v1491
        %vm1519 = vcmask 1046528
        %v1520 = vsel %vm1519, %v1518, %v1506
        %1521 = vst.msk [vmem:[#allocation6] sm:$0xff] %vm798, %v1520
        %v1522 = vld [vmem:[#allocation6] sm:$0xff]
        %1524 = vrot.lane.b32.xlu0 %v1522, 96
        %v1525 = vpop.permute.xlu0 %1524
        %v1527 = vadd.f32 %v1522, %v1525
        %v1528 = vld [vmem:[%s11] sm:$0x1]
        %v1529 = vadd.f32 %v666, %v669
        %v1531 = vperm.slane %v1528, 0
        %v1533 = vmul.f32 %v1531, %v1529
        %v1534 = vadd.f32 %v1527, %v1533
        %v1535 = vmul.f32 %v1534, %v617
        %v1536 = vadd.f32 %v1535, %v526
        %1537 = vst.msk [vmem:[%s525] sm:$0xff] %vm527, %v1536
        %s1538 = sand.u32 %s297, 1
        %s1539 = scalar_lea.sflag [#allocation9], %s1538
        %s1540 = sand.u32 %s297, 1
        %s1541 = smul.addr %s1540, 8
        %s1542 = scalar_lea.vmem [#allocation19], %s1541
        // Predicated region
        $region97: #{tpu_custom_call.1} parent=67 // pred_check
          %p1543 = pneg %p307
        $region98: #{tpu_custom_call.1} parent=67 // pred_check_branch
          %1545 = sbr.rel (%p1543) target = $region100
        $region99: #{tpu_custom_call.1} parent=67 // pred_region
          %1547 = vsyncadd %s1539, 0
          %s1548 = smul.addr %s32, 8
          %s1549 = scalar_lea.hbm %s12, %s1548
          %s1551 = sshll.u32 %s1542, 4
          %s1552 = int_to_ptr.vmem [resolvable:$true] %s1551
          %s1553 = sshll.u32 %s1549, 4
          %s1554 = int_to_ptr.hbm [resolvable:$true] %s1553
          %1556 = dma.vmem_to_hbm [thread:$0]  %s1552, 128, %s1554, %s1539
        $region100: #{tpu_custom_call.1} parent=67 // pred_fallthru
          _
      $region68: #{tpu_custom_call.1} parent=5 // pred_fallthru
        _
      %p1557 = scmp.le.s32.totalorder 2, %s27
      // Predicated region
      $region101: #{tpu_custom_call.1} parent=5 // pred_check
        %p1558 = pneg %p1557
      $region102: #{tpu_custom_call.1} parent=5 // pred_check_branch
        %1560 = sbr.rel (%p1558) target = $region104
      $region103: #{tpu_custom_call.1} parent=5 // pred_region
        %s1561 = ssub.s32 %s27, 2
        // Predicated region
        $region105: #{tpu_custom_call.1} parent=103 // pred_check
          %p1562 = pneg %p313
        $region106: #{tpu_custom_call.1} parent=103 // pred_check_branch
          %1564 = sbr.rel (%p1562) target = $region108
        $region107: #{tpu_custom_call.1} parent=103 // pred_region
          %s1565 = sand.u32 %s298, 1
          %s1566 = scalar_lea.sflag [#allocation9], %s1565
          %s1567 = sand.u32 %s298, 1
          %s1568 = smul.addr %s1567, 8
          %s1569 = scalar_lea.vmem [#allocation19], %s1568
          %1571 = dma.done %s1566, 128
        $region108: #{tpu_custom_call.1} parent=103 // pred_fallthru
          _
      $region104: #{tpu_custom_call.1} parent=5 // pred_fallthru
        _
    $region6: #{tpu_custom_call.1} parent=1 // loop_footer
      %s31 = sadd.s32 1, %s27
    $region7: #{tpu_custom_call.1} parent=1 // loop_footer_branch
      %26 = sbr.rel target = $region3
    $region8: #{tpu_custom_call.1} parent=1 // loop_exit
      _
    %1572 = vsyncpa [#allocation8], 1
    %s1573 = scalar_lea.sflag [#allocation8], 1
    %1574 = vsyncpa %s1573, 1
    %1575 = vsyncpa [#allocation11], 1
    %1576 = vsyncpa [#allocation14], 1
    %1577 = vsyncpa [#allocation17], 1
    %1578 = vsyncpa [#allocation9], 1
    %s1579 = scalar_lea.sflag [#allocation9], 1
    %1580 = vsyncpa %s1579, 1

</llo_original>
